<compile_context>
chip_gen: v6e
topology: v6e:2x2x1
jax: 0.10.0
libtpu: 0.0.40
codegen_flags: <defaults>
</compile_context>

<pallas_src>
import math

import jax
import jax.numpy as jnp
from jax.experimental import pallas as pl
from jax.experimental.pallas import tpu as pltpu


# ---------------------------------------------------------------------------
# Fused kernel: QKV proj + single-head attention + residual/LayerNorm + block-diag MLPs
# ---------------------------------------------------------------------------
def fused_pose_head_kernel(x_ref, w_in_ref, b_in_ref, wo_ref, bo_ref,
                           gamma_ref, beta_ref,
                           w1_ref, b1_ref, w2_ref, b2_ref, w3_ref, b3_ref,
                           out_ref, src_scratch):
    TB, J, D = x_ref.shape
    seg = w_in_ref.shape[-1] // 3            # lane-padded width of each q/k/v segment

    x = x_ref[...]                           # (TB, J, D) f32
    x2d = x.reshape(TB * J, D)               # leading-dim merge; layout-preserving (J % 8 == 0)

    # ---- fused q/k/v projection: one MXU push over all TB*J rows (bf16 ops, f32 acc) ----
    qkv = jnp.dot(x2d.astype(jnp.bfloat16), w_in_ref[...],
                  preferred_element_type=jnp.float32) + b_in_ref[...]
    qkv = qkv.reshape(TB, J, 3 * seg)
    q = qkv[:, :, 0:D].astype(jnp.bfloat16)           # 1/sqrt(D) already folded into Wq/bq
    k = qkv[:, :, seg:seg + D].astype(jnp.bfloat16)   # slice starts are lane-tile aligned
    v = qkv[:, :, 2 * seg:2 * seg + D].astype(jnp.bfloat16)

    # ---- single-head attention (nhead=1 -> head_dim = D), softmax in f32 ---------------
    s = jnp.einsum("bqd,bkd->bqk", q, k, preferred_element_type=jnp.float32)
    s = s - jnp.max(s, axis=-1, keepdims=True)
    p = jnp.exp(s)
    p = p * pl.reciprocal(jnp.sum(p, axis=-1, keepdims=True), approx=True)   # EUP divide
    attn = jnp.einsum("bqk,bkd->bqd", p.astype(jnp.bfloat16), v,
                      preferred_element_type=jnp.float32)                     # (TB, J, D)

    # ---- output projection + residual + LayerNorm (eps=1e-5, biased variance) ----------
    src2 = jnp.dot(attn.reshape(TB * J, D).astype(jnp.bfloat16), wo_ref[...],
                   preferred_element_type=jnp.float32) + bo_ref[...]
    src = x2d + src2                          # residual (dropout p = 0.0 -> identity)
    mean = jnp.mean(src, axis=-1, keepdims=True)
    var = jnp.mean((src - mean) ** 2, axis=-1, keepdims=True)
    src = (src - mean) * jax.lax.rsqrt(var + 1e-5)
    src = src * gamma_ref[...] + beta_ref[...]

    # ---- block-diagonal per-joint MLPs: 3 big matmuls, lane-dense (TB, Op) store --------
    src_scratch[...] = src.reshape(TB, J, D)
    # lane-concat the J joint rows -> (TB, J*D) input for the block-diag weights
    xbd = jnp.concatenate([src_scratch[:, j, :] for j in range(J)], axis=-1)
    xbd = xbd.astype(jnp.bfloat16)
    h = jnp.dot(xbd, w1_ref[...], preferred_element_type=jnp.float32) + b1_ref[...]
    h = jnp.maximum(h, 0.0).astype(jnp.bfloat16)
    h = jnp.dot(h, w2_ref[...], preferred_element_type=jnp.float32) + b2_ref[...]
    h = jnp.maximum(h, 0.0).astype(jnp.bfloat16)
    y = jnp.dot(h, w3_ref[...], preferred_element_type=jnp.float32) + b3_ref[...]
    out_ref[...] = y                          # (TB, Op): unmasked lane-dense store


# ---------------------------------------------------------------------------
# One-time weight preparation (off the per-call launch path)
# ---------------------------------------------------------------------------
def _block_diag(w):
    """(J, K, N) stacked weights -> (J*K, J*N) block-diagonal (exact zeros off-diagonal)."""
    Jn, K, N = w.shape
    out = jnp.zeros((Jn * K, Jn * N), w.dtype)
    for j in range(Jn):
        out = out.at[j * K:(j + 1) * K, j * N:(j + 1) * N].set(w[j])
    return out


def prepare_params(params, compute_dtype=jnp.bfloat16):
    D = params["wq_t"].shape[0]
    J, _, H = params["mlp_w1"].shape
    O = params["mlp_w3"].shape[-1]
    seg = int(pl.cdiv(D, 128)) * 128          # lane-aligned q/k/v segments
    Op = int(pl.cdiv(J * O, 128)) * 128       # lane-dense output width
    scale = 1.0 / math.sqrt(D)                # fold the MHA 1/sqrt(D) into Wq / bq

    padw = lambda w: jnp.pad(w, ((0, 0), (0, seg - D)))
    w_in = jnp.concatenate([padw(params["wq_t"] * scale), padw(params["wk_t"]),
                            padw(params["wv_t"])], axis=-1)          # (D, 3*seg)
    b_in = jnp.concatenate([padw(params["bq"] * scale), padw(params["bk"]),
                            padw(params["bv"])], axis=-1)            # (1, 3*seg)

    # TODO(synk): for large configs (e.g. J=24, hidden=256) the block-diagonal MLP weights
    # grow as J^2 -- tile them over an extra grid axis instead of loading them whole.
    w1 = _block_diag(params["mlp_w1"])                               # (J*D, J*H)
    w2 = _block_diag(params["mlp_w2"])                               # (J*H, J*H)
    w3 = jnp.pad(_block_diag(params["mlp_w3"]), ((0, 0), (0, Op - J * O)))   # (J*H, Op)
    b1 = params["mlp_b1"].reshape(1, J * H)
    b2 = params["mlp_b2"].reshape(1, J * H)
    b3 = jnp.pad(params["mlp_b3"].reshape(1, J * O), ((0, 0), (0, Op - J * O)))

    f32 = jnp.float32
    return {
        "w_in": w_in.astype(compute_dtype), "b_in": b_in.astype(f32),
        "wo": params["wo_t"].astype(compute_dtype), "bo": params["bo"].astype(f32),
        "gamma": params["ln_gamma"].astype(f32), "beta": params["ln_beta"].astype(f32),
        "w1": w1.astype(compute_dtype), "b1": b1.astype(f32),
        "w2": w2.astype(compute_dtype), "b2": b2.astype(f32),
        "w3": w3.astype(compute_dtype), "b3": b3.astype(f32),
        "dims": (int(D), int(J), int(H), int(O), int(Op), int(seg)),
    }


# ---------------------------------------------------------------------------
# Wrapper
# ---------------------------------------------------------------------------
def _choose_batch_tile(B, max_tile=256):
    # Per-TB-row VMEM footprint is ~50-60 KB of f32 intermediates, so prefer the largest
    # tile (fewest ~600-cycle grid steps).  No ">=2 grid steps" constraint: v5e/v6e have a
    # single TensorCore.  TODO(synk): on v7x keep an even number of grid steps when
    # B > max_tile so both TensorCores get identical work.
    return min(B, max_tile)


def self_attention_pose_head(pose_feat, bbox_info, prep, *, batch_tile=None):
    """pose_feat: (B, J, hidden), bbox_info: (B, 3) or None -> (B, J, out_dim)."""
    B, J, _ = pose_feat.shape
    D, Jp, H, O, Op, seg = prep["dims"]
    assert J == Jp, (J, Jp)
    assert J % 8 == 0, (
        f"num_joints={J} must be a multiple of 8 (sublane tile) so the (TB,J,D)<->(TB*J,D) "
        "reshapes stay layout-preserving")

    if bbox_info is not None:
        bb = jnp.broadcast_to(bbox_info[:, None, :], (B, J, bbox_info.shape[-1]))
        x = jnp.concatenate([pose_feat, bb], axis=-1)
    else:
        x = pose_feat
    x = x.astype(jnp.float32)
    assert x.shape[-1] == D, (x.shape, D)

    TB = _choose_batch_tile(B) if batch_tile is None else batch_tile
    Bp = int(pl.cdiv(B, TB)) * TB             # pad awkward B instead of degenerating to TB=1
    if Bp != B:
        x = jnp.pad(x, ((0, Bp - B), (0, 0), (0, 0)))
    grid = (Bp // TB,)

    flops = int(2 * Bp * J * D * 3 * seg + 4 * Bp * J * J * D + 2 * Bp * J * D * D
                + 2 * Bp * ((J * D) * (J * H) + (J * H) * (J * H) + (J * H) * Op))
    cost = pl.CostEstimate(
        flops=flops,
        transcendentals=int(Bp * J * J + 2 * Bp * J),
        bytes_accessed=int(
            4 * (x.size + Bp * Op)
            + 2 * (prep["w_in"].size + prep["wo"].size + prep["w1"].size
                   + prep["w2"].size + prep["w3"].size)
            + 4 * (prep["b_in"].size + prep["bo"].size + prep["gamma"].size
                   + prep["beta"].size + prep["b1"].size + prep["b2"].size
                   + prep["b3"].size)))

    rep2 = lambda b: (0, 0)                   # resident (un-tiled) weight blocks
    out = pl.pallas_call(
        fused_pose_head_kernel,
        out_shape=jax.ShapeDtypeStruct((Bp, Op), jnp.float32),
        grid=grid,
        in_specs=[
            pl.BlockSpec((TB, J, D), lambda b: (b, 0, 0)),      # x
            pl.BlockSpec((D, 3 * seg), rep2),                   # fused in_proj W^T (bf16, padded)
            pl.BlockSpec((1, 3 * seg), rep2),                   # fused in_proj bias (f32, padded)
            pl.BlockSpec((D, D), rep2),                         # Wo^T (bf16)
            pl.BlockSpec((1, D), rep2),                         # bo
            pl.BlockSpec((1, D), rep2),                         # LN gamma
            pl.BlockSpec((1, D), rep2),                         # LN beta
            pl.BlockSpec((J * D, J * H), rep2),                 # block-diag MLP W1 (bf16)
            pl.BlockSpec((1, J * H), rep2),                     # MLP b1
            pl.BlockSpec((J * H, J * H), rep2),                 # block-diag MLP W2 (bf16)
            pl.BlockSpec((1, J * H), rep2),                     # MLP b2
            pl.BlockSpec((J * H, Op), rep2),                    # block-diag MLP W3 (bf16, lane-padded)
            pl.BlockSpec((1, Op), rep2),                        # MLP b3 (lane-padded)
        ],
        out_specs=pl.BlockSpec((TB, Op), lambda b: (b, 0)),     # lane-dense output slab
        scratch_shapes=[pltpu.VMEM((TB, J, D), jnp.float32)],
        compiler_params=pltpu.CompilerParams(
            dimension_semantics=("parallel",),
            vmem_limit_bytes=48 * 1024 * 1024),                 # > 16/32 MiB defaults, < v7x 64 MiB
        cost_estimate=cost,
    )(x, prep["w_in"], prep["b_in"], prep["wo"], prep["bo"],
      prep["gamma"], prep["beta"],
      prep["w1"], prep["b1"], prep["w2"], prep["b2"], prep["w3"], prep["b3"])

    return out[:B, :J * O].reshape(B, J, O)                     # (B, J, out_dim)


# ---------------------------------------------------------------------------
# Pure-JAX f32 reference (faithful to the PyTorch module)
# ---------------------------------------------------------------------------
def reference_forward(pose_feat, bbox_info, params):
    B, J, _ = pose_feat.shape
    bb = jnp.broadcast_to(bbox_info[:, None, :], (B, J, bbox_info.shape[-1]))
    x = jnp.concatenate([pose_feat, bb], axis=-1).astype(jnp.float32)  # (B, J, D)
    D = x.shape[-1]
    q = x @ params["wq_t"] + params["bq"]
    k = x @ params["wk_t"] + params["bk"]
    v = x @ params["wv_t"] + params["bv"]
    scores = jnp.einsum("bqd,bkd->bqk", q, k) / math.sqrt(D)
    p = jax.nn.softmax(scores, axis=-1)
    attn = jnp.einsum("bqk,bkd->bqd", p, v)
    src2 = attn @ params["wo_t"] + params["bo"]
    src = x + src2
    mean = jnp.mean(src, axis=-1, keepdims=True)
    var = jnp.mean((src - mean) ** 2, axis=-1, keepdims=True)
    src = (src - mean) / jnp.sqrt(var + 1e-5) * params["ln_gamma"] + params["ln_beta"]
    h = jnp.einsum("bjd,jdh->bjh", src, params["mlp_w1"]) + params["mlp_b1"][:, 0][None]
    h = jnp.maximum(h, 0.0)
    h = jnp.einsum("bjh,jhk->bjk", h, params["mlp_w2"]) + params["mlp_b2"][:, 0][None]
    h = jnp.maximum(h, 0.0)
    y = jnp.einsum("bjh,jho->bjo", h, params["mlp_w3"]) + params["mlp_b3"][:, 0][None]
    return y


# ---------------------------------------------------------------------------
# Deterministic parameter init (synthetic -- shapes follow the module __init__)
# ---------------------------------------------------------------------------
def init_params(key, D, J, mlp_hidden, out_dim):
    ks = jax.random.split(key, 16)
    s = 0.1

    def rnd(k, shape):
        return (s * jax.random.normal(k, shape)).astype(jnp.float32)

    return {
        # nn.MultiheadAttention(D, 1): in_proj (3D, D) split into q/k/v, out_proj (D, D)
        "wq_t": rnd(ks[0], (D, D)), "wk_t": rnd(ks[1], (D, D)), "wv_t": rnd(ks[2], (D, D)),
        "bq": rnd(ks[3], (1, D)), "bk": rnd(ks[4], (1, D)), "bv": rnd(ks[5], (1, D)),
        "wo_t": rnd(ks[6], (D, D)), "bo": rnd(ks[7], (1, D)),
        # nn.LayerNorm(D)
        "ln_gamma": jnp.ones((1, D), jnp.float32),
        "ln_beta": jnp.zeros((1, D), jnp.float32),
        # num_joints MLPs stacked along joint axis: Linear(D,H), Linear(H,H), Linear(H,O)
        "mlp_w1": rnd(ks[8], (J, D, mlp_hidden)), "mlp_b1": rnd(ks[9], (J, 1, mlp_hidden)),
        "mlp_w2": rnd(ks[10], (J, mlp_hidden, mlp_hidden)), "mlp_b2": rnd(ks[11], (J, 1, mlp_hidden)),
        "mlp_w3": rnd(ks[12], (J, mlp_hidden, out_dim)), "mlp_b3": rnd(ks[13], (J, 1, out_dim)),
    }


if __name__ == "__main__":
    # Small shapes consistent with the module (num_joints, hidden_dim, with_bbox=True)
    B, J, hidden_dim, out_dim, mlp_hidden = 2, 8, 32, 6, 32
    D = hidden_dim + 3   # with_bbox=True -> hidden_dim + 3

    key = jax.random.PRNGKey(0)
    k_feat, k_bbox, k_par = jax.random.split(key, 3)
    pose_feat = jax.random.normal(k_feat, (B, J, hidden_dim), dtype=jnp.float32)
    bbox_info = jax.random.normal(k_bbox, (B, 3), dtype=jnp.float32)
    params = init_params(k_par, D, J, mlp_hidden, out_dim)

    prep = prepare_params(params)            # one-time weight fusion/padding/bf16 cast
    fwd = jax.jit(lambda pf, bb: self_attention_pose_head(pf, bb, prep))
    pred = jax.block_until_ready(fwd(pose_feat, bbox_info))

    ref = reference_forward(pose_feat, bbox_info, params)
    assert pred.shape == (B, J, out_dim), pred.shape
    max_err = float(jnp.max(jnp.abs(pred - ref)))
    # bf16 MXU operands + approx softmax reciprocal -> relaxed tolerance vs the f32 reference
    assert jnp.allclose(pred, ref, atol=3e-2, rtol=3e-2), f"max abs diff {max_err}"

    print("KERNEL_OK")
</pallas_src>

<mosaic_0001>
module attributes {stable_mosaic.version = 11 : i64} {
  func.func @fused_pose_head_kernel(%arg0: i32, %arg1: memref<2x8x35xf32, #tpu.memory_space<vmem>>, %arg2: memref<35x384xbf16, #tpu.memory_space<vmem>>, %arg3: memref<1x384xf32, #tpu.memory_space<vmem>>, %arg4: memref<35x35xbf16, #tpu.memory_space<vmem>>, %arg5: memref<1x35xf32, #tpu.memory_space<vmem>>, %arg6: memref<1x35xf32, #tpu.memory_space<vmem>>, %arg7: memref<1x35xf32, #tpu.memory_space<vmem>>, %arg8: memref<280x256xbf16, #tpu.memory_space<vmem>>, %arg9: memref<1x256xf32, #tpu.memory_space<vmem>>, %arg10: memref<256x256xbf16, #tpu.memory_space<vmem>>, %arg11: memref<1x256xf32, #tpu.memory_space<vmem>>, %arg12: memref<256x128xbf16, #tpu.memory_space<vmem>>, %arg13: memref<1x128xf32, #tpu.memory_space<vmem>>, %arg14: memref<2x128xf32, #tpu.memory_space<vmem>>, %arg15: memref<2x8x35xf32, #tpu.memory_space<vmem>>) attributes {dimension_semantics = [#tpu.dimension_semantics<parallel>], iteration_bounds = array<i64: 1>, scalar_prefetch = 0 : i64, scratch_operands = 1 : i64, tpu.core_type = #tpu.core_type<tc>, window_params = [{transform_indices = @transform_0, window_bounds = array<i64: 2, 8, 35>}, {pipeline_mode = #tpu.pipeline_mode<synchronous>, transform_indices = @transform_1, window_bounds = array<i64: 35, 384>}, {pipeline_mode = #tpu.pipeline_mode<synchronous>, transform_indices = @transform_2, window_bounds = array<i64: 1, 384>}, {pipeline_mode = #tpu.pipeline_mode<synchronous>, transform_indices = @transform_3, window_bounds = array<i64: 35, 35>}, {pipeline_mode = #tpu.pipeline_mode<synchronous>, transform_indices = @transform_4, window_bounds = array<i64: 1, 35>}, {pipeline_mode = #tpu.pipeline_mode<synchronous>, transform_indices = @transform_5, window_bounds = array<i64: 1, 35>}, {pipeline_mode = #tpu.pipeline_mode<synchronous>, transform_indices = @transform_6, window_bounds = array<i64: 1, 35>}, {pipeline_mode = #tpu.pipeline_mode<synchronous>, transform_indices = @transform_7, window_bounds = array<i64: 280, 256>}, {pipeline_mode = #tpu.pipeline_mode<synchronous>, transform_indices = @transform_8, window_bounds = array<i64: 1, 256>}, {pipeline_mode = #tpu.pipeline_mode<synchronous>, transform_indices = @transform_9, window_bounds = array<i64: 256, 256>}, {pipeline_mode = #tpu.pipeline_mode<synchronous>, transform_indices = @transform_10, window_bounds = array<i64: 1, 256>}, {pipeline_mode = #tpu.pipeline_mode<synchronous>, transform_indices = @transform_11, window_bounds = array<i64: 256, 128>}, {pipeline_mode = #tpu.pipeline_mode<synchronous>, transform_indices = @transform_12, window_bounds = array<i64: 1, 128>}, {transform_indices = @transform_13, window_bounds = array<i64: 2, 128>}]} {
    %c0 = arith.constant 0 : index
    %c0_0 = arith.constant 0 : index
    %c0_1 = arith.constant 0 : index
    %0 = vector.load %arg1[%c0, %c0_0, %c0_1] : memref<2x8x35xf32, #tpu.memory_space<vmem>>, vector<2x8x35xf32>
    %1 = vector.shape_cast %0 : vector<2x8x35xf32> to vector<16x35xf32>
    %2 = arith.truncf %1 : vector<16x35xf32> to vector<16x35xbf16>
    %c0_2 = arith.constant 0 : index
    %c0_3 = arith.constant 0 : index
    %3 = vector.load %arg2[%c0_2, %c0_3] : memref<35x384xbf16, #tpu.memory_space<vmem>>, vector<35x384xbf16>
    %cst = arith.constant dense<0.000000e+00> : vector<16x384xf32>
    %4 = tpu.matmul %2, %3, %cst {dimension_numbers = #tpu.dot_dimension_numbers<[1], [0], [0], [1], [0, 0, 1, 1], [], []>} : vector<16x35xbf16>, vector<35x384xbf16>, vector<16x384xf32> -> vector<16x384xf32>
    %c0_4 = arith.constant 0 : index
    %c0_5 = arith.constant 0 : index
    %5 = vector.load %arg3[%c0_4, %c0_5] : memref<1x384xf32, #tpu.memory_space<vmem>>, vector<1x384xf32>
    %6 = vector.broadcast %5 : vector<1x384xf32> to vector<16x384xf32>
    %7 = arith.addf %4, %6 : vector<16x384xf32>
    %8 = vector.shape_cast %7 : vector<16x384xf32> to vector<2x8x384xf32>
    %9 = vector.extract_strided_slice %8 {offsets = [0, 0, 0], sizes = [2, 8, 35], strides = [1, 1, 1]} : vector<2x8x384xf32> to vector<2x8x35xf32>
    %10 = arith.truncf %9 : vector<2x8x35xf32> to vector<2x8x35xbf16>
    %11 = vector.extract_strided_slice %8 {offsets = [0, 0, 128], sizes = [2, 8, 35], strides = [1, 1, 1]} : vector<2x8x384xf32> to vector<2x8x35xf32>
    %12 = arith.truncf %11 : vector<2x8x35xf32> to vector<2x8x35xbf16>
    %13 = vector.extract_strided_slice %8 {offsets = [0, 0, 256], sizes = [2, 8, 35], strides = [1, 1, 1]} : vector<2x8x384xf32> to vector<2x8x35xf32>
    %14 = arith.truncf %13 : vector<2x8x35xf32> to vector<2x8x35xbf16>
    "tpu.trace_start"() <{level = 10 : i32, message = "bqd,bkd->bqk"}> : () -> ()
    %cst_6 = arith.constant dense<0.000000e+00> : vector<2x8x8xf32>
    %15 = tpu.matmul %10, %12, %cst_6 {dimension_numbers = #tpu.dot_dimension_numbers<[2], [2], [1], [1], [0, 0, 0, 1, 1, 1], [0], [0]>} : vector<2x8x35xbf16>, vector<2x8x35xbf16>, vector<2x8x8xf32> -> vector<2x8x8xf32>
    "tpu.trace_stop"() : () -> ()
    %cst_7 = arith.constant dense<0xFF800000> : vector<2x8xf32>
    %16 = vector.multi_reduction <maximumf>, %15, %cst_7 [2] : vector<2x8x8xf32> to vector<2x8xf32>
    %17 = vector.shape_cast %16 : vector<2x8xf32> to vector<2x8x1xf32>
    %18 = vector.broadcast %17 : vector<2x8x1xf32> to vector<2x8x8xf32>
    %19 = arith.subf %15, %18 : vector<2x8x8xf32>
    %20 = math.exp %19 : vector<2x8x8xf32>
    %cst_8 = arith.constant dense<0.000000e+00> : vector<2x8xf32>
    %21 = vector.multi_reduction <add>, %20, %cst_8 [2] : vector<2x8x8xf32> to vector<2x8xf32>
    %22 = vector.shape_cast %21 : vector<2x8xf32> to vector<2x8x1xf32>
    %23 = tpu.reciprocal %22 {approx = true} : vector<2x8x1xf32> -> vector<2x8x1xf32>
    %24 = vector.broadcast %23 : vector<2x8x1xf32> to vector<2x8x8xf32>
    %25 = arith.mulf %20, %24 : vector<2x8x8xf32>
    %26 = arith.truncf %25 : vector<2x8x8xf32> to vector<2x8x8xbf16>
    "tpu.trace_start"() <{level = 10 : i32, message = "bqk,bkd->bqd"}> : () -> ()
    %cst_9 = arith.constant dense<0.000000e+00> : vector<2x8x35xf32>
    %27 = tpu.matmul %26, %14, %cst_9 {dimension_numbers = #tpu.dot_dimension_numbers<[2], [1], [1], [2], [0, 0, 0, 1, 1, 2], [0], [0]>} : vector<2x8x8xbf16>, vector<2x8x35xbf16>, vector<2x8x35xf32> -> vector<2x8x35xf32>
    "tpu.trace_stop"() : () -> ()
    %28 = vector.shape_cast %27 : vector<2x8x35xf32> to vector<16x35xf32>
    %29 = arith.truncf %28 : vector<16x35xf32> to vector<16x35xbf16>
    %c0_10 = arith.constant 0 : index
    %c0_11 = arith.constant 0 : index
    %30 = vector.load %arg4[%c0_10, %c0_11] : memref<35x35xbf16, #tpu.memory_space<vmem>>, vector<35x35xbf16>
    %cst_12 = arith.constant dense<0.000000e+00> : vector<16x35xf32>
    %31 = tpu.matmul %29, %30, %cst_12 {dimension_numbers = #tpu.dot_dimension_numbers<[1], [0], [0], [1], [0, 0, 1, 1], [], []>} : vector<16x35xbf16>, vector<35x35xbf16>, vector<16x35xf32> -> vector<16x35xf32>
    %c0_13 = arith.constant 0 : index
    %c0_14 = arith.constant 0 : index
    %32 = vector.load %arg5[%c0_13, %c0_14] : memref<1x35xf32, #tpu.memory_space<vmem>>, vector<1x35xf32>
    %33 = vector.broadcast %32 : vector<1x35xf32> to vector<16x35xf32>
    %34 = arith.addf %31, %33 : vector<16x35xf32>
    %35 = arith.addf %1, %34 : vector<16x35xf32>
    %cst_15 = arith.constant dense<0.000000e+00> : vector<16xf32>
    %36 = vector.multi_reduction <add>, %35, %cst_15 [1] : vector<16x35xf32> to vector<16xf32>
    %37 = vector.shape_cast %36 : vector<16xf32> to vector<16x1xf32>
    %cst_16 = arith.constant 3.500000e+01 : f32
    %38 = vector.broadcast %cst_16 : f32 to vector<16x1xf32>
    %39 = arith.divf %37, %38 : vector<16x1xf32>
    %40 = vector.broadcast %39 : vector<16x1xf32> to vector<16x35xf32>
    %41 = arith.subf %35, %40 : vector<16x35xf32>
    %42 = arith.mulf %41, %41 : vector<16x35xf32>
    %cst_17 = arith.constant dense<0.000000e+00> : vector<16xf32>
    %43 = vector.multi_reduction <add>, %42, %cst_17 [1] : vector<16x35xf32> to vector<16xf32>
    %44 = vector.shape_cast %43 : vector<16xf32> to vector<16x1xf32>
    %cst_18 = arith.constant 3.500000e+01 : f32
    %45 = vector.broadcast %cst_18 : f32 to vector<16x1xf32>
    %46 = arith.divf %44, %45 : vector<16x1xf32>
    %47 = vector.broadcast %39 : vector<16x1xf32> to vector<16x35xf32>
    %48 = arith.subf %35, %47 : vector<16x35xf32>
    %cst_19 = arith.constant 9.99999974E-6 : f32
    %49 = vector.broadcast %cst_19 : f32 to vector<16x1xf32>
    %50 = arith.addf %46, %49 : vector<16x1xf32>
    %51 = math.rsqrt %50 : vector<16x1xf32>
    %52 = vector.broadcast %51 : vector<16x1xf32> to vector<16x35xf32>
    %53 = arith.mulf %48, %52 : vector<16x35xf32>
    %c0_20 = arith.constant 0 : index
    %c0_21 = arith.constant 0 : index
    %54 = vector.load %arg6[%c0_20, %c0_21] : memref<1x35xf32, #tpu.memory_space<vmem>>, vector<1x35xf32>
    %55 = vector.broadcast %54 : vector<1x35xf32> to vector<16x35xf32>
    %56 = arith.mulf %53, %55 : vector<16x35xf32>
    %c0_22 = arith.constant 0 : index
    %c0_23 = arith.constant 0 : index
    %57 = vector.load %arg7[%c0_22, %c0_23] : memref<1x35xf32, #tpu.memory_space<vmem>>, vector<1x35xf32>
    %58 = vector.broadcast %57 : vector<1x35xf32> to vector<16x35xf32>
    %59 = arith.addf %56, %58 : vector<16x35xf32>
    %60 = vector.shape_cast %59 : vector<16x35xf32> to vector<2x8x35xf32>
    %c0_24 = arith.constant 0 : index
    %c0_25 = arith.constant 0 : index
    %c0_26 = arith.constant 0 : index
    %61 = vector.load %arg15[%c0_24, %c0_25, %c0_26] : memref<2x8x35xf32, #tpu.memory_space<vmem>>, vector<2x8x35xf32>
    tpu.vector_store %arg15[%c0_24, %c0_25, %c0_26], %60 {strides = array<i32>} : memref<2x8x35xf32, #tpu.memory_space<vmem>>, vector<2x8x35xf32>,
    %c0_27 = arith.constant 0 : index
    %c0_28 = arith.constant 0 : index
    %c0_29 = arith.constant 0 : index
    %62 = vector.load %arg15[%c0_27, %c0_28, %c0_29] : memref<2x8x35xf32, #tpu.memory_space<vmem>>, vector<2x1x35xf32>
    %63 = vector.shape_cast %62 : vector<2x1x35xf32> to vector<2x35xf32>
    %c0_30 = arith.constant 0 : index
    %c1 = arith.constant 1 : index
    %c0_31 = arith.constant 0 : index
    %64 = vector.load %arg15[%c0_30, %c1, %c0_31] : memref<2x8x35xf32, #tpu.memory_space<vmem>>, vector<2x1x35xf32>
    %65 = vector.shape_cast %64 : vector<2x1x35xf32> to vector<2x35xf32>
    %c0_32 = arith.constant 0 : index
    %c2 = arith.constant 2 : index
    %c0_33 = arith.constant 0 : index
    %66 = vector.load %arg15[%c0_32, %c2, %c0_33] : memref<2x8x35xf32, #tpu.memory_space<vmem>>, vector<2x1x35xf32>
    %67 = vector.shape_cast %66 : vector<2x1x35xf32> to vector<2x35xf32>
    %c0_34 = arith.constant 0 : index
    %c3 = arith.constant 3 : index
    %c0_35 = arith.constant 0 : index
    %68 = vector.load %arg15[%c0_34, %c3, %c0_35] : memref<2x8x35xf32, #tpu.memory_space<vmem>>, vector<2x1x35xf32>
    %69 = vector.shape_cast %68 : vector<2x1x35xf32> to vector<2x35xf32>
    %c0_36 = arith.constant 0 : index
    %c4 = arith.constant 4 : index
    %c0_37 = arith.constant 0 : index
    %70 = vector.load %arg15[%c0_36, %c4, %c0_37] : memref<2x8x35xf32, #tpu.memory_space<vmem>>, vector<2x1x35xf32>
    %71 = vector.shape_cast %70 : vector<2x1x35xf32> to vector<2x35xf32>
    %c0_38 = arith.constant 0 : index
    %c5 = arith.constant 5 : index
    %c0_39 = arith.constant 0 : index
    %72 = vector.load %arg15[%c0_38, %c5, %c0_39] : memref<2x8x35xf32, #tpu.memory_space<vmem>>, vector<2x1x35xf32>
    %73 = vector.shape_cast %72 : vector<2x1x35xf32> to vector<2x35xf32>
    %c0_40 = arith.constant 0 : index
    %c6 = arith.constant 6 : index
    %c0_41 = arith.constant 0 : index
    %74 = vector.load %arg15[%c0_40, %c6, %c0_41] : memref<2x8x35xf32, #tpu.memory_space<vmem>>, vector<2x1x35xf32>
    %75 = vector.shape_cast %74 : vector<2x1x35xf32> to vector<2x35xf32>
    %c0_42 = arith.constant 0 : index
    %c7 = arith.constant 7 : index
    %c0_43 = arith.constant 0 : index
    %76 = vector.load %arg15[%c0_42, %c7, %c0_43] : memref<2x8x35xf32, #tpu.memory_space<vmem>>, vector<2x1x35xf32>
    %77 = vector.shape_cast %76 : vector<2x1x35xf32> to vector<2x35xf32>
    %78 = tpu.concatenate %63, %65, %67, %69, %71, %73, %75, %77 in 1 : vector<2x35xf32>, vector<2x35xf32>, vector<2x35xf32>, vector<2x35xf32>, vector<2x35xf32>, vector<2x35xf32>, vector<2x35xf32>, vector<2x35xf32> -> vector<2x280xf32>
    %79 = arith.truncf %78 : vector<2x280xf32> to vector<2x280xbf16>
    %c0_44 = arith.constant 0 : index
    %c0_45 = arith.constant 0 : index
    %80 = vector.load %arg8[%c0_44, %c0_45] : memref<280x256xbf16, #tpu.memory_space<vmem>>, vector<280x256xbf16>
    %cst_46 = arith.constant dense<0.000000e+00> : vector<2x256xf32>
    %81 = tpu.matmul %79, %80, %cst_46 {dimension_numbers = #tpu.dot_dimension_numbers<[1], [0], [0], [1], [0, 0, 1, 1], [], []>} : vector<2x280xbf16>, vector<280x256xbf16>, vector<2x256xf32> -> vector<2x256xf32>
    %c0_47 = arith.constant 0 : index
    %c0_48 = arith.constant 0 : index
    %82 = vector.load %arg9[%c0_47, %c0_48] : memref<1x256xf32, #tpu.memory_space<vmem>>, vector<1x256xf32>
    %83 = vector.broadcast %82 : vector<1x256xf32> to vector<2x256xf32>
    %84 = arith.addf %81, %83 : vector<2x256xf32>
    %cst_49 = arith.constant 0.000000e+00 : f32
    %85 = vector.broadcast %cst_49 : f32 to vector<2x256xf32>
    %86 = arith.maximumf %84, %85 : vector<2x256xf32>
    %87 = arith.truncf %86 : vector<2x256xf32> to vector<2x256xbf16>
    %c0_50 = arith.constant 0 : index
    %c0_51 = arith.constant 0 : index
    %88 = vector.load %arg10[%c0_50, %c0_51] : memref<256x256xbf16, #tpu.memory_space<vmem>>, vector<256x256xbf16>
    %cst_52 = arith.constant dense<0.000000e+00> : vector<2x256xf32>
    %89 = tpu.matmul %87, %88, %cst_52 {dimension_numbers = #tpu.dot_dimension_numbers<[1], [0], [0], [1], [0, 0, 1, 1], [], []>} : vector<2x256xbf16>, vector<256x256xbf16>, vector<2x256xf32> -> vector<2x256xf32>
    %c0_53 = arith.constant 0 : index
    %c0_54 = arith.constant 0 : index
    %90 = vector.load %arg11[%c0_53, %c0_54] : memref<1x256xf32, #tpu.memory_space<vmem>>, vector<1x256xf32>
    %91 = vector.broadcast %90 : vector<1x256xf32> to vector<2x256xf32>
    %92 = arith.addf %89, %91 : vector<2x256xf32>
    %cst_55 = arith.constant 0.000000e+00 : f32
    %93 = vector.broadcast %cst_55 : f32 to vector<2x256xf32>
    %94 = arith.maximumf %92, %93 : vector<2x256xf32>
    %95 = arith.truncf %94 : vector<2x256xf32> to vector<2x256xbf16>
    %c0_56 = arith.constant 0 : index
    %c0_57 = arith.constant 0 : index
    %96 = vector.load %arg12[%c0_56, %c0_57] : memref<256x128xbf16, #tpu.memory_space<vmem>>, vector<256x128xbf16>
    %cst_58 = arith.constant dense<0.000000e+00> : vector<2x128xf32>
    %97 = tpu.matmul %95, %96, %cst_58 {dimension_numbers = #tpu.dot_dimension_numbers<[1], [0], [0], [1], [0, 0, 1, 1], [], []>} : vector<2x256xbf16>, vector<256x128xbf16>, vector<2x128xf32> -> vector<2x128xf32>
    %c0_59 = arith.constant 0 : index
    %c0_60 = arith.constant 0 : index
    %98 = vector.load %arg13[%c0_59, %c0_60] : memref<1x128xf32, #tpu.memory_space<vmem>>, vector<1x128xf32>
    %99 = vector.broadcast %98 : vector<1x128xf32> to vector<2x128xf32>
    %100 = arith.addf %97, %99 : vector<2x128xf32>
    %c0_61 = arith.constant 0 : index
    %c0_62 = arith.constant 0 : index
    %101 = vector.load %arg14[%c0_61, %c0_62] : memref<2x128xf32, #tpu.memory_space<vmem>>, vector<2x128xf32>
    tpu.vector_store %arg14[%c0_61, %c0_62], %100 {strides = array<i32>} : memref<2x128xf32, #tpu.memory_space<vmem>>, vector<2x128xf32>,
    return
  }
  func.func @transform_0(%arg0: i32) -> (i32, i32, i32) {
    %c0_i32 = arith.constant 0 : i32
    %c0_i32_0 = arith.constant 0 : i32
    %c0_i32_1 = arith.constant 0 : i32
    return %arg0, %c0_i32, %c0_i32_0 : i32, i32, i32
  }
  func.func @transform_1(%arg0: i32) -> (i32, i32) {
    %c0_i32 = arith.constant 0 : i32
    %c0_i32_0 = arith.constant 0 : i32
    %c0_i32_1 = arith.constant 0 : i32
    return %c0_i32, %c0_i32_0 : i32, i32
  }
  func.func @transform_2(%arg0: i32) -> (i32, i32) {
    %c0_i32 = arith.constant 0 : i32
    %c0_i32_0 = arith.constant 0 : i32
    %c0_i32_1 = arith.constant 0 : i32
    return %c0_i32, %c0_i32_0 : i32, i32
  }
  func.func @transform_3(%arg0: i32) -> (i32, i32) {
    %c0_i32 = arith.constant 0 : i32
    %c0_i32_0 = arith.constant 0 : i32
    %c0_i32_1 = arith.constant 0 : i32
    return %c0_i32, %c0_i32_0 : i32, i32
  }
  func.func @transform_4(%arg0: i32) -> (i32, i32) {
    %c0_i32 = arith.constant 0 : i32
    %c0_i32_0 = arith.constant 0 : i32
    %c0_i32_1 = arith.constant 0 : i32
    return %c0_i32, %c0_i32_0 : i32, i32
  }
  func.func @transform_5(%arg0: i32) -> (i32, i32) {
    %c0_i32 = arith.constant 0 : i32
    %c0_i32_0 = arith.constant 0 : i32
    %c0_i32_1 = arith.constant 0 : i32
    return %c0_i32, %c0_i32_0 : i32, i32
  }
  func.func @transform_6(%arg0: i32) -> (i32, i32) {
    %c0_i32 = arith.constant 0 : i32
    %c0_i32_0 = arith.constant 0 : i32
    %c0_i32_1 = arith.constant 0 : i32
    return %c0_i32, %c0_i32_0 : i32, i32
  }
  func.func @transform_7(%arg0: i32) -> (i32, i32) {
    %c0_i32 = arith.constant 0 : i32
    %c0_i32_0 = arith.constant 0 : i32
    %c0_i32_1 = arith.constant 0 : i32
    return %c0_i32, %c0_i32_0 : i32, i32
  }
  func.func @transform_8(%arg0: i32) -> (i32, i32) {
    %c0_i32 = arith.constant 0 : i32
    %c0_i32_0 = arith.constant 0 : i32
    %c0_i32_1 = arith.constant 0 : i32
    return %c0_i32, %c0_i32_0 : i32, i32
  }
  func.func @transform_9(%arg0: i32) -> (i32, i32) {
    %c0_i32 = arith.constant 0 : i32
    %c0_i32_0 = arith.constant 0 : i32
    %c0_i32_1 = arith.constant 0 : i32
    return %c0_i32, %c0_i32_0 : i32, i32
  }
  func.func @transform_10(%arg0: i32) -> (i32, i32) {
    %c0_i32 = arith.constant 0 : i32
    %c0_i32_0 = arith.constant 0 : i32
    %c0_i32_1 = arith.constant 0 : i32
    return %c0_i32, %c0_i32_0 : i32, i32
  }
  func.func @transform_11(%arg0: i32) -> (i32, i32) {
    %c0_i32 = arith.constant 0 : i32
    %c0_i32_0 = arith.constant 0 : i32
    %c0_i32_1 = arith.constant 0 : i32
    return %c0_i32, %c0_i32_0 : i32, i32
  }
  func.func @transform_12(%arg0: i32) -> (i32, i32) {
    %c0_i32 = arith.constant 0 : i32
    %c0_i32_0 = arith.constant 0 : i32
    %c0_i32_1 = arith.constant 0 : i32
    return %c0_i32, %c0_i32_0 : i32, i32
  }
  func.func @transform_13(%arg0: i32) -> (i32, i32) {
    %c0_i32 = arith.constant 0 : i32
    %c0_i32_0 = arith.constant 0 : i32
    return %arg0, %c0_i32 : i32, i32
  }
}

</mosaic_0001>

<llo_original>
// kernel: _lambda_.1
$region0: #{_lambda_.1}
  #allocation0 [shape = 'u32[]', space=smem, size = 0x4, offset = 0x4, fixed_abs, tag = 'smem constant byte address 0x4 - core index']
  #allocation1 [shape = 'u32[144,128]{1,0:T(1,128)}', space=vmem, size = 0x12000, scoped, tag = 'internal scratch']
  #allocation2 [shape = 'f32[2,8,35]{2,1,0:T(8,128)}', space=vmem, size = 0x2000, scoped, tag = 'scratch operand']
  %s0 = inlined_call_operand.vmem [shape: f32[2,8,35], index: 0, kind: input, shape index: {}]
  %s1 = inlined_call_operand.vmem [shape: bf16[35,384], index: 1, kind: input, shape index: {}]
  %s2 = inlined_call_operand.vmem [shape: f32[1,384], index: 2, kind: input, shape index: {}]
  %s3 = inlined_call_operand.vmem [shape: bf16[35,35], index: 3, kind: input, shape index: {}]
  %s4 = inlined_call_operand.vmem [shape: f32[1,35], index: 4, kind: input, shape index: {}]
  %s5 = inlined_call_operand.vmem [shape: f32[1,35], index: 5, kind: input, shape index: {}]
  %s6 = inlined_call_operand.vmem [shape: f32[1,35], index: 6, kind: input, shape index: {}]
  %s7 = inlined_call_operand.hbm [shape: bf16[280,256], index: 7, kind: input, shape index: {}]
  %s8 = inlined_call_operand.vmem [shape: f32[1,256], index: 8, kind: input, shape index: {}]
  %s9 = inlined_call_operand.hbm [shape: bf16[256,256], index: 9, kind: input, shape index: {}]
  %s10 = inlined_call_operand.vmem [shape: f32[1,256], index: 10, kind: input, shape index: {}]
  %s11 = inlined_call_operand.hbm [shape: bf16[256,128], index: 11, kind: input, shape index: {}]
  %s12 = inlined_call_operand.vmem [shape: f32[1,128], index: 12, kind: input, shape index: {}]
  %s13 = inlined_call_operand.vmem [shape: f32[2,128], index: 13, kind: output, shape index: {}]
  %s14 = sld [smem:[#allocation0]]
  $region74: #{_lambda_.1} parent=0
    _
  %s16 = ssub.s32 1, %s14
  %s17 = scalar_select 0, %s16, %s14
  $region1: #{_lambda_.1} parent=0
    #allocation3 [shape = 'u8[143360]{0}', space=vmem, size = 0x23000, scoped, tag = 'input window, operand 7, single buffered']
    #allocation4 [shape = 's32[1]{0}', space=sflag, size = 0x4, scoped, tag = 'scoped memory for _lambda_.1']
    #allocation5 [shape = 'u8[131072]{0}', space=vmem, size = 0x20000, scoped, tag = 'input window, operand 9, single buffered']
    #allocation6 [shape = 's32[1]{0}', space=sflag, size = 0x4, scoped, tag = 'scoped memory for _lambda_.1']
    #allocation7 [shape = 'u8[65536]{0}', space=vmem, size = 0x10000, scoped, tag = 'input window, operand 11, single buffered']
    %18 = vsyncpa [#allocation4], 0
    %19 = vsyncpa [#allocation6], 0
    // Predicated region
    $region2: #{_lambda_.1} parent=1 // pred_check
      _
    $region3: #{_lambda_.1} parent=1 // pred_check_branch
      %21 = sbr.rel (0) target = $region5
    $region4: #{_lambda_.1} parent=1 // pred_region
      _
    $region5: #{_lambda_.1} parent=1 // pred_fallthru
      _
    // Predicated region
    $region6: #{_lambda_.1} parent=1 // pred_check
      _
    $region7: #{_lambda_.1} parent=1 // pred_check_branch
      %23 = sbr.rel (0) target = $region9
    $region8: #{_lambda_.1} parent=1 // pred_region
      _
    $region9: #{_lambda_.1} parent=1 // pred_fallthru
      _
    // Predicated region
    $region10: #{_lambda_.1} parent=1 // pred_check
      _
    $region11: #{_lambda_.1} parent=1 // pred_check_branch
      %25 = sbr.rel (0) target = $region13
    $region12: #{_lambda_.1} parent=1 // pred_region
      _
    $region13: #{_lambda_.1} parent=1 // pred_fallthru
      _
    // Predicated region
    $region14: #{_lambda_.1} parent=1 // pred_check
      _
    $region15: #{_lambda_.1} parent=1 // pred_check_branch
      %27 = sbr.rel (0) target = $region17
    $region16: #{_lambda_.1} parent=1 // pred_region
      _
    $region17: #{_lambda_.1} parent=1 // pred_fallthru
      _
    // Predicated region
    $region18: #{_lambda_.1} parent=1 // pred_check
      _
    $region19: #{_lambda_.1} parent=1 // pred_check_branch
      %29 = sbr.rel (0) target = $region21
    $region20: #{_lambda_.1} parent=1 // pred_region
      _
    $region21: #{_lambda_.1} parent=1 // pred_fallthru
      _
    // Predicated region
    $region22: #{_lambda_.1} parent=1 // pred_check
      _
    $region23: #{_lambda_.1} parent=1 // pred_check_branch
      %31 = sbr.rel (0) target = $region25
    $region24: #{_lambda_.1} parent=1 // pred_region
      _
    $region25: #{_lambda_.1} parent=1 // pred_fallthru
      _
    // Predicated region
    $region26: #{_lambda_.1} parent=1 // pred_check
      _
    $region27: #{_lambda_.1} parent=1 // pred_check_branch
      %33 = sbr.rel (0) target = $region29
    $region28: #{_lambda_.1} parent=1 // pred_region
      _
    $region29: #{_lambda_.1} parent=1 // pred_fallthru
      _
    // Predicated region
    $region30: #{_lambda_.1} parent=1 // pred_check
      _
    $region31: #{_lambda_.1} parent=1 // pred_check_branch
      %35 = sbr.rel (0) target = $region33
    $region32: #{_lambda_.1} parent=1 // pred_region
      %s37 = ssub.s32 4480, 4480
      %38 = vsyncadd [#allocation4], %s37
      %s39 = sshll.u32 [#allocation3], 4
      %s40 = int_to_ptr.vmem [resolvable:$true] %s39
      %45 = dma.hbm_to_vmem [thread:$0]  %s7, 4480, %s40, [#allocation4], 128, 128, 8
    $region33: #{_lambda_.1} parent=1 // pred_fallthru
      _
    // Predicated region
    $region34: #{_lambda_.1} parent=1 // pred_check
      _
    $region35: #{_lambda_.1} parent=1 // pred_check_branch
      %47 = sbr.rel (0) target = $region37
    $region36: #{_lambda_.1} parent=1 // pred_region
      _
    $region37: #{_lambda_.1} parent=1 // pred_fallthru
      _
    // Predicated region
    $region38: #{_lambda_.1} parent=1 // pred_check
      _
    $region39: #{_lambda_.1} parent=1 // pred_check_branch
      %49 = sbr.rel (0) target = $region41
    $region40: #{_lambda_.1} parent=1 // pred_region
      %s51 = ssub.s32 4096, 4096
      %52 = vsyncadd [#allocation6], %s51
      %s53 = sshll.u32 [#allocation5], 4
      %s54 = int_to_ptr.vmem [resolvable:$true] %s53
      %59 = dma.hbm_to_vmem [thread:$0]  %s9, 4096, %s54, [#allocation6], 128, 128, 8
    $region41: #{_lambda_.1} parent=1 // pred_fallthru
      _
    // Predicated region
    $region42: #{_lambda_.1} parent=1 // pred_check
      _
    $region43: #{_lambda_.1} parent=1 // pred_check_branch
      %61 = sbr.rel (0) target = $region45
    $region44: #{_lambda_.1} parent=1 // pred_region
      _
    $region45: #{_lambda_.1} parent=1 // pred_fallthru
      _
    // Predicated region
    $region46: #{_lambda_.1} parent=1 // pred_check
      _
    $region47: #{_lambda_.1} parent=1 // pred_check_branch
      %63 = sbr.rel (0) target = $region49
    $region48: #{_lambda_.1} parent=1 // pred_region
      %s65 = ssub.s32 2048, 2048
      %66 = vsyncadd [#allocation6], %s65
      %s67 = sshll.u32 [#allocation7], 4
      %s68 = int_to_ptr.vmem [resolvable:$true] %s67
      %73 = dma.hbm_to_vmem [thread:$0]  %s11, 2048, %s68, [#allocation6], 64, 64, 4
    $region49: #{_lambda_.1} parent=1 // pred_fallthru
      _
    // Predicated region
    $region50: #{_lambda_.1} parent=1 // pred_check
      _
    $region51: #{_lambda_.1} parent=1 // pred_check_branch
      %75 = sbr.rel (0) target = $region53
    $region52: #{_lambda_.1} parent=1 // pred_region
      _
    $region53: #{_lambda_.1} parent=1 // pred_fallthru
      _
    // Predicated region
    $region54: #{_lambda_.1} parent=1 // pred_check
      _
    $region55: #{_lambda_.1} parent=1 // pred_check_branch
      %77 = sbr.rel (0) target = $region57
    $region56: #{_lambda_.1} parent=1 // pred_region
      %78 = dma.done [#allocation4], 4480
    $region57: #{_lambda_.1} parent=1 // pred_fallthru
      _
    // Predicated region
    $region58: #{_lambda_.1} parent=1 // pred_check
      _
    $region59: #{_lambda_.1} parent=1 // pred_check_branch
      %80 = sbr.rel (0) target = $region61
    $region60: #{_lambda_.1} parent=1 // pred_region
      %81 = dma.done [#allocation6], 4096
    $region61: #{_lambda_.1} parent=1 // pred_fallthru
      _
    // Predicated region
    $region62: #{_lambda_.1} parent=1 // pred_check
      _
    $region63: #{_lambda_.1} parent=1 // pred_check_branch
      %83 = sbr.rel (0) target = $region65
    $region64: #{_lambda_.1} parent=1 // pred_region
      %84 = dma.done [#allocation6], 2048
    $region65: #{_lambda_.1} parent=1 // pred_fallthru
      _
    %v86 = vld [vmem:[%s0] sm:$0xff]
    %v87 = vld [vmem:[%s0 + $0x8] sm:$0xff]
    %v88 = vpack.c.bf16 %v87, %v86
    %v89 = vld [vmem:[%s1] sm:$0xff]
    %v90 = vld [vmem:[%s1 + $0x8] sm:$0xf]
    %v91 = vld [vmem:[%s1 + $0xc] sm:$0xff]
    %v92 = vld [vmem:[%s1 + $0x14] sm:$0xf]
    %v93 = vld [vmem:[%s1 + $0x18] sm:$0xff]
    %v94 = vld [vmem:[%s1 + $0x20] sm:$0xf]
    %v95 = vld [vmem:[%s1 + $0x24] sm:$0xff]
    %v96 = vld [vmem:[%s1 + $0x2c] sm:$0xf]
    %v97 = vld [vmem:[%s1 + $0x30] sm:$0x33]
    %v98 = vld [vmem:[%s1 + $0x38] sm:$0x3]
    %v99 = vld [vmem:[%s2] sm:$0x7]
    %v101 = vlaneseq
    %v102 = vshrl.u32 %v101, 7
    %v103 = vsub.s32 0, %v102
    %v104 = vrot.slane %v99, %v103
    %v105 = vlaneseq
    %v106 = vshrl.u32 %v105, 7
    %v107 = vsub.s32 1, %v106
    %v108 = vrot.slane %v99, %v107
    %v109 = vlaneseq
    %v110 = vshrl.u32 %v109, 7
    %v111 = vsub.s32 2, %v110
    %v112 = vrot.slane %v99, %v111
    %v126 = vunpack.c.l.b16 %v89
    %v127 = vunpack.c.h.b16 %v89
    %v128 = vunpack.c.l.b16 %v90
    %v129 = vunpack.c.l.b16 %v91
    %v130 = vunpack.c.h.b16 %v91
    %v131 = vunpack.c.l.b16 %v92
    %v132 = vunpack.c.l.b16 %v93
    %v133 = vunpack.c.h.b16 %v93
    %v134 = vunpack.c.l.b16 %v94
    %v135 = vunpack.c.l.b16 %v95
    %v136 = vunpack.c.h.b16 %v95
    %v137 = vunpack.c.l.b16 %v96
    %v138 = vunpack.c.l.b16 %v97
    %v139 = vunpack.c.h.b16 %v97
    %v140 = vunpack.c.l.b16 %v98
    %v141 = vpack.c.b16 %v129, %v126
    %v142 = vpack.c.b16 %v130, %v127
    %v143 = vpack.c.b16 %v131, %v128
    %v144 = vpack.c.b16 %v135, %v132
    %v145 = vpack.c.b16 %v136, %v133
    %v146 = vpack.c.b16 %v137, %v134
    %v147 = vpack.c.b16 %v138, %v138
    %v148 = vpack.c.b16 %v139, %v139
    %v149 = vpack.c.b16 %v140, %v140
    %vm156 = vcmask 285696
    %v158 = vsel %vm156, %v88, 0
    %vm160 = vcmask 1040384
    %vm161 = vcmask 1041408
    %v162 = vsel %vm160, 4294967295, 65535
    %v163 = vsel %vm161, %v162, 0
    %v165 = vand.u32 %v147, %v163
    %v168 = vand.u32 %v148, %v163
    %v171 = vand.u32 %v149, %v163
    %173 = vmatprep.subr.bf16.mxu0 0
    %174 = vmatpush1.bf16.msra.mxu0 0
    %175 = vmatprep.subr.bf16.mxu0 0
    %176 = vmatpush1.bf16.msra.mxu0 0
    %177 = vmatprep.subr.bf16.mxu0 0
    %178 = vmatpush1.bf16.msra.mxu0 0
    %179 = vmatprep.subr.bf16.mxu0 0
    %180 = vmatpush1.bf16.msra.mxu0 0
    %181 = vmatprep.subr.bf16.mxu0 0
    %182 = vmatpush1.bf16.msra.mxu0 0
    %183 = vmatprep.subr.bf16.mxu0 %v168
    %184 = vmatpush1.bf16.msra.mxu0 %v165
    %185 = vmatprep.subr.bf16.mxu0 %v145
    %186 = vmatpush1.bf16.msra.mxu0 %v144
    %187 = vmatprep.subr.bf16.mxu0 %v142
    %188 = vmatpush1.bf16.msra.mxu0 %v141
    %189 = vmatprep.subr.bf16.mxu0 0
    %190 = vmatpush2.bf16.msra.mxu0 0
    %191 = vmatprep.subr.bf16.mxu0 0
    %192 = vmatpush2.bf16.msra.mxu0 0
    %193 = vmatprep.subr.bf16.mxu0 0
    %194 = vmatpush2.bf16.msra.mxu0 0
    %195 = vmatprep.subr.bf16.mxu0 0
    %196 = vmatpush2.bf16.msra.mxu0 0
    %197 = vmatprep.subr.bf16.mxu0 0
    %198 = vmatpush2.bf16.msra.mxu0 0
    %199 = vmatprep.subr.bf16.mxu0 0
    %200 = vmatpush2.bf16.msra.mxu0 0
    %201 = vmatprep.subr.bf16.mxu0 0
    %202 = vmatpush2.bf16.msra.mxu0 0
    %203 = vmatprep.subr.bf16.mxu0 0
    %204 = vmatpush2.bf16.msra.mxu0 0
    %205 = vmatprep.mubr.bf16.mxu0 0
    %206 = vmatmul.mubr.bf16.gmra.mxu0 %v158
    %v207 = vpop.f32.mrf.mxu0
    %v208 = vadd.f32 %v104, %v207
    %v209 = vpop.f32.mrf.mxu0
    %v210 = vadd.f32 %v108, %v209
    %v211 = vpop.f32.mrf.mxu0
    %v212 = vadd.f32 %v104, %v211
    %v213 = vpop.f32.mrf.mxu0
    %v214 = vadd.f32 %v108, %v213
    %215 = vdwg.mxu0
    %216 = vmatprep.subr.bf16.mxu0 0
    %217 = vmatpush1.bf16.msra.mxu0 0
    %218 = vmatprep.subr.bf16.mxu0 0
    %219 = vmatpush1.bf16.msra.mxu0 0
    %220 = vmatprep.subr.bf16.mxu0 0
    %221 = vmatpush1.bf16.msra.mxu0 0
    %222 = vmatprep.subr.bf16.mxu0 0
    %223 = vmatpush1.bf16.msra.mxu0 0
    %224 = vmatprep.subr.bf16.mxu0 0
    %225 = vmatpush1.bf16.msra.mxu0 0
    %226 = vmatprep.subr.bf16.mxu0 0
    %227 = vmatpush1.bf16.msra.mxu0 %v171
    %228 = vmatprep.subr.bf16.mxu0 0
    %229 = vmatpush1.bf16.msra.mxu0 %v146
    %230 = vmatprep.subr.bf16.mxu0 0
    %231 = vmatpush1.bf16.msra.mxu0 %v143
    %232 = vmatprep.subr.bf16.mxu0 0
    %233 = vmatpush2.bf16.msra.mxu0 0
    %234 = vmatprep.subr.bf16.mxu0 0
    %235 = vmatpush2.bf16.msra.mxu0 0
    %236 = vmatprep.subr.bf16.mxu0 0
    %237 = vmatpush2.bf16.msra.mxu0 0
    %238 = vmatprep.subr.bf16.mxu0 0
    %239 = vmatpush2.bf16.msra.mxu0 0
    %240 = vmatprep.subr.bf16.mxu0 0
    %241 = vmatpush2.bf16.msra.mxu0 0
    %242 = vmatprep.subr.bf16.mxu0 0
    %243 = vmatpush2.bf16.msra.mxu0 0
    %244 = vmatprep.subr.bf16.mxu0 0
    %245 = vmatpush2.bf16.msra.mxu0 0
    %246 = vmatprep.subr.bf16.mxu0 0
    %247 = vmatpush2.bf16.msra.mxu0 0
    %248 = vmatprep.mubr.bf16.mxu0 0
    %249 = vmatmul.mubr.bf16.gmra.mxu0 %v158
    %v250 = vpop.f32.mrf.mxu0
    %v251 = vadd.f32 %v112, %v250
    %v252 = vpop.f32.mrf.mxu0
    %v253 = vpop.f32.mrf.mxu0
    %v254 = vadd.f32 %v112, %v253
    %v255 = vpop.f32.mrf.mxu0
    %256 = vdwg.mxu0
    %v257 = vpack.c.bf16 %v208, %v208
    %v258 = vpack.c.bf16 %v212, %v212
    %v259 = vpack.c.bf16 %v210, %v210
    %v260 = vpack.c.bf16 %v214, %v214
    %v261 = vpack.c.bf16 %v251, %v251
    %v262 = vpack.c.bf16 %v254, %v254
    %v264 = vsel %vm156, %v257, 0
    %v267 = vsel %vm156, %v259, 0
    %269 = vmatprep.subr.bf16.mxu0 0
    %270 = vmatpush1.bf16.xpose.msra.mxu0 0
    %271 = vmatprep.subr.bf16.mxu0 0
    %272 = vmatpush1.bf16.xpose.msra.mxu0 0
    %273 = vmatprep.subr.bf16.mxu0 0
    %274 = vmatpush1.bf16.xpose.msra.mxu0 0
    %275 = vmatprep.subr.bf16.mxu0 0
    %276 = vmatpush1.bf16.xpose.msra.mxu0 0
    %277 = vmatprep.subr.bf16.mxu0 0
    %278 = vmatpush1.bf16.xpose.msra.mxu0 0
    %279 = vmatprep.subr.bf16.mxu0 0
    %280 = vmatpush1.bf16.xpose.msra.mxu0 0
    %281 = vmatprep.subr.bf16.mxu0 0
    %282 = vmatpush1.bf16.xpose.msra.mxu0 0
    %283 = vmatprep.subr.bf16.mxu0 0
    %284 = vmatpush1.bf16.xpose.msra.mxu0 %v267
    %285 = vmatprep.subr.bf16.mxu0 0
    %286 = vmatpush2.bf16.xpose.msra.mxu0 0
    %287 = vmatprep.subr.bf16.mxu0 0
    %288 = vmatpush2.bf16.xpose.msra.mxu0 0
    %289 = vmatprep.subr.bf16.mxu0 0
    %290 = vmatpush2.bf16.xpose.msra.mxu0 0
    %291 = vmatprep.subr.bf16.mxu0 0
    %292 = vmatpush2.bf16.xpose.msra.mxu0 0
    %293 = vmatprep.subr.bf16.mxu0 0
    %294 = vmatpush2.bf16.xpose.msra.mxu0 0
    %295 = vmatprep.subr.bf16.mxu0 0
    %296 = vmatpush2.bf16.xpose.msra.mxu0 0
    %297 = vmatprep.subr.bf16.mxu0 0
    %298 = vmatpush2.bf16.xpose.msra.mxu0 0
    %299 = vmatprep.subr.bf16.mxu0 0
    %300 = vmatpush2.bf16.xpose.msra.mxu0 0
    %301 = vmatprep.mubr.bf16.mxu0 0
    %302 = vmatmul.mubr.bf16.gmra.mxu0 %v264
    %v303 = vpop.f32.mrf.mxu0
    %v304 = vadd.f32 0.0, %v303
    %v305 = vpop.f32.mrf.mxu0
    %v306 = vpop.f32.mrf.mxu0
    %v307 = vpop.f32.mrf.mxu0
    %308 = vdwg.mxu0
    %v310 = vsel %vm156, %v258, 0
    %v313 = vsel %vm156, %v260, 0
    %315 = vmatprep.subr.bf16.mxu0 0
    %316 = vmatpush1.bf16.xpose.msra.mxu0 0
    %317 = vmatprep.subr.bf16.mxu0 0
    %318 = vmatpush1.bf16.xpose.msra.mxu0 0
    %319 = vmatprep.subr.bf16.mxu0 0
    %320 = vmatpush1.bf16.xpose.msra.mxu0 0
    %321 = vmatprep.subr.bf16.mxu0 0
    %322 = vmatpush1.bf16.xpose.msra.mxu0 0
    %323 = vmatprep.subr.bf16.mxu0 0
    %324 = vmatpush1.bf16.xpose.msra.mxu0 0
    %325 = vmatprep.subr.bf16.mxu0 0
    %326 = vmatpush1.bf16.xpose.msra.mxu0 0
    %327 = vmatprep.subr.bf16.mxu0 0
    %328 = vmatpush1.bf16.xpose.msra.mxu0 0
    %329 = vmatprep.subr.bf16.mxu0 0
    %330 = vmatpush1.bf16.xpose.msra.mxu0 %v313
    %331 = vmatprep.subr.bf16.mxu0 0
    %332 = vmatpush2.bf16.xpose.msra.mxu0 0
    %333 = vmatprep.subr.bf16.mxu0 0
    %334 = vmatpush2.bf16.xpose.msra.mxu0 0
    %335 = vmatprep.subr.bf16.mxu0 0
    %336 = vmatpush2.bf16.xpose.msra.mxu0 0
    %337 = vmatprep.subr.bf16.mxu0 0
    %338 = vmatpush2.bf16.xpose.msra.mxu0 0
    %339 = vmatprep.subr.bf16.mxu0 0
    %340 = vmatpush2.bf16.xpose.msra.mxu0 0
    %341 = vmatprep.subr.bf16.mxu0 0
    %342 = vmatpush2.bf16.xpose.msra.mxu0 0
    %343 = vmatprep.subr.bf16.mxu0 0
    %344 = vmatpush2.bf16.xpose.msra.mxu0 0
    %345 = vmatprep.subr.bf16.mxu0 0
    %346 = vmatpush2.bf16.xpose.msra.mxu0 0
    %347 = vmatprep.mubr.bf16.mxu0 0
    %348 = vmatmul.mubr.bf16.gmra.mxu0 %v310
    %v349 = vpop.f32.mrf.mxu0
    %v350 = vadd.f32 0.0, %v349
    %v351 = vpop.f32.mrf.mxu0
    %v352 = vpop.f32.mrf.mxu0
    %v353 = vpop.f32.mrf.mxu0
    %354 = vdwg.mxu0
    %vm355 = vcmask 64512
    %v356 = vsel %vm355, %v304, -inf
    %357 = vmax.xlane.f32.xlu0 %v356
    %v358 = vpop.xlane.xlu0 %357
    %v359 = vsel %vm355, %v350, -inf
    %360 = vmax.xlane.f32.xlu0 %v359
    %v361 = vpop.xlane.xlu0 %360
    %v362 = vsub.f32 %v304, %v358
    %v363 = vsub.f32 %v350, %v361
    %v364 = vmul.f32 %v362, 1.442695
    %v365 = vpow.pop %v364
    %v366 = vmul.f32 %v363, 1.442695
    %v367 = vpow.pop %v366
    %v368 = vsel %vm355, %v365, 0.0
    %369 = vadd.xlane.f32.xlu0 %v368
    %v370 = vpop.xlane.xlu0 %369
    %v371 = vsel %vm355, %v367, 0.0
    %372 = vadd.xlane.f32.xlu0 %v371
    %v373 = vpop.xlane.xlu0 %372
    %v374 = vrcp.pop %v370
    %v375 = vrcp.pop %v373
    %v376 = vmul.f32 %v365, %v374
    %v377 = vmul.f32 %v367, %v375
    %v378 = vpack.c.bf16 %v376, %v376
    %v379 = vpack.c.bf16 %v377, %v377
    %v381 = vsel %vm355, %v378, 0
    %vm383 = vcmask 1043456
    %v385 = vsel %vm383, %v261, 0
    %387 = vmatprep.subr.bf16.mxu0 0
    %388 = vmatpush1.bf16.msra.mxu0 0
    %389 = vmatprep.subr.bf16.mxu0 0
    %390 = vmatpush1.bf16.msra.mxu0 0
    %391 = vmatprep.subr.bf16.mxu0 0
    %392 = vmatpush1.bf16.msra.mxu0 0
    %393 = vmatprep.subr.bf16.mxu0 0
    %394 = vmatpush1.bf16.msra.mxu0 0
    %395 = vmatprep.subr.bf16.mxu0 0
    %396 = vmatpush1.bf16.msra.mxu0 0
    %397 = vmatprep.subr.bf16.mxu0 0
    %398 = vmatpush1.bf16.msra.mxu0 0
    %399 = vmatprep.subr.bf16.mxu0 0
    %400 = vmatpush1.bf16.msra.mxu0 0
    %401 = vmatprep.subr.bf16.mxu0 0
    %402 = vmatpush1.bf16.msra.mxu0 %v385
    %403 = vmatprep.subr.bf16.mxu0 0
    %404 = vmatpush2.bf16.msra.mxu0 0
    %405 = vmatprep.subr.bf16.mxu0 0
    %406 = vmatpush2.bf16.msra.mxu0 0
    %407 = vmatprep.subr.bf16.mxu0 0
    %408 = vmatpush2.bf16.msra.mxu0 0
    %409 = vmatprep.subr.bf16.mxu0 0
    %410 = vmatpush2.bf16.msra.mxu0 0
    %411 = vmatprep.subr.bf16.mxu0 0
    %412 = vmatpush2.bf16.msra.mxu0 0
    %413 = vmatprep.subr.bf16.mxu0 0
    %414 = vmatpush2.bf16.msra.mxu0 0
    %415 = vmatprep.subr.bf16.mxu0 0
    %416 = vmatpush2.bf16.msra.mxu0 0
    %417 = vmatprep.subr.bf16.mxu0 0
    %418 = vmatpush2.bf16.msra.mxu0 0
    %419 = vmatprep.mubr.bf16.mxu0 0
    %420 = vmatmul.mubr.bf16.gmra.mxu0 %v381
    %v421 = vpop.f32.mrf.mxu0
    %v422 = vadd.f32 0.0, %v421
    %v423 = vpop.f32.mrf.mxu0
    %v424 = vpop.f32.mrf.mxu0
    %v425 = vpop.f32.mrf.mxu0
    %426 = vdwg.mxu0
    %v428 = vsel %vm355, %v379, 0
    %v431 = vsel %vm383, %v262, 0
    %433 = vmatprep.subr.bf16.mxu0 0
    %434 = vmatpush1.bf16.msra.mxu0 0
    %435 = vmatprep.subr.bf16.mxu0 0
    %436 = vmatpush1.bf16.msra.mxu0 0
    %437 = vmatprep.subr.bf16.mxu0 0
    %438 = vmatpush1.bf16.msra.mxu0 0
    %439 = vmatprep.subr.bf16.mxu0 0
    %440 = vmatpush1.bf16.msra.mxu0 0
    %441 = vmatprep.subr.bf16.mxu0 0
    %442 = vmatpush1.bf16.msra.mxu0 0
    %443 = vmatprep.subr.bf16.mxu0 0
    %444 = vmatpush1.bf16.msra.mxu0 0
    %445 = vmatprep.subr.bf16.mxu0 0
    %446 = vmatpush1.bf16.msra.mxu0 0
    %447 = vmatprep.subr.bf16.mxu0 0
    %448 = vmatpush1.bf16.msra.mxu0 %v431
    %449 = vmatprep.subr.bf16.mxu0 0
    %450 = vmatpush2.bf16.msra.mxu0 0
    %451 = vmatprep.subr.bf16.mxu0 0
    %452 = vmatpush2.bf16.msra.mxu0 0
    %453 = vmatprep.subr.bf16.mxu0 0
    %454 = vmatpush2.bf16.msra.mxu0 0
    %455 = vmatprep.subr.bf16.mxu0 0
    %456 = vmatpush2.bf16.msra.mxu0 0
    %457 = vmatprep.subr.bf16.mxu0 0
    %458 = vmatpush2.bf16.msra.mxu0 0
    %459 = vmatprep.subr.bf16.mxu0 0
    %460 = vmatpush2.bf16.msra.mxu0 0
    %461 = vmatprep.subr.bf16.mxu0 0
    %462 = vmatpush2.bf16.msra.mxu0 0
    %463 = vmatprep.subr.bf16.mxu0 0
    %464 = vmatpush2.bf16.msra.mxu0 0
    %465 = vmatprep.mubr.bf16.mxu0 0
    %466 = vmatmul.mubr.bf16.gmra.mxu0 %v428
    %v467 = vpop.f32.mrf.mxu0
    %v468 = vadd.f32 0.0, %v467
    %v469 = vpop.f32.mrf.mxu0
    %v470 = vpop.f32.mrf.mxu0
    %v471 = vpop.f32.mrf.mxu0
    %472 = vdwg.mxu0
    %v473 = vpack.c.bf16 %v468, %v422
    %v474 = vld [vmem:[%s3] sm:$0xf]
    %v475 = vld [vmem:[%s3 + $0x4] sm:$0xf]
    %v476 = vld [vmem:[%s3 + $0x8] sm:$0xf]
    %v477 = vld [vmem:[%s3 + $0xc] sm:$0xf]
    %v478 = vld [vmem:[%s3 + $0x10] sm:$0x3]
    %v479 = vld [vmem:[%s4] sm:$0x1]
    %v481 = vlaneseq
    %v482 = vshrl.u32 %v481, 7
    %v483 = vsub.s32 0, %v482
    %v484 = vrot.slane %v479, %v483
    %v491 = vunpack.c.l.b16 %v474
    %v492 = vunpack.c.l.b16 %v475
    %v493 = vunpack.c.l.b16 %v476
    %v494 = vunpack.c.l.b16 %v477
    %v495 = vunpack.c.l.b16 %v478
    %v496 = vpack.c.b16 %v492, %v491
    %v497 = vpack.c.b16 %v494, %v493
    %v498 = vpack.c.b16 %v495, %v495
    %v502 = vsel %vm156, %v473, 0
    %v505 = vand.u32 %v498, %v163
    %507 = vmatprep.subr.bf16.mxu0 0
    %508 = vmatpush1.bf16.msra.mxu0 0
    %509 = vmatprep.subr.bf16.mxu0 0
    %510 = vmatpush1.bf16.msra.mxu0 0
    %511 = vmatprep.subr.bf16.mxu0 0
    %512 = vmatpush1.bf16.msra.mxu0 0
    %513 = vmatprep.subr.bf16.mxu0 0
    %514 = vmatpush1.bf16.msra.mxu0 0
    %515 = vmatprep.subr.bf16.mxu0 0
    %516 = vmatpush1.bf16.msra.mxu0 0
    %517 = vmatprep.subr.bf16.mxu0 0
    %518 = vmatpush1.bf16.msra.mxu0 %v505
    %519 = vmatprep.subr.bf16.mxu0 0
    %520 = vmatpush1.bf16.msra.mxu0 %v497
    %521 = vmatprep.subr.bf16.mxu0 0
    %522 = vmatpush1.bf16.msra.mxu0 %v496
    %523 = vmatprep.subr.bf16.mxu0 0
    %524 = vmatpush2.bf16.msra.mxu0 0
    %525 = vmatprep.subr.bf16.mxu0 0
    %526 = vmatpush2.bf16.msra.mxu0 0
    %527 = vmatprep.subr.bf16.mxu0 0
    %528 = vmatpush2.bf16.msra.mxu0 0
    %529 = vmatprep.subr.bf16.mxu0 0
    %530 = vmatpush2.bf16.msra.mxu0 0
    %531 = vmatprep.subr.bf16.mxu0 0
    %532 = vmatpush2.bf16.msra.mxu0 0
    %533 = vmatprep.subr.bf16.mxu0 0
    %534 = vmatpush2.bf16.msra.mxu0 0
    %535 = vmatprep.subr.bf16.mxu0 0
    %536 = vmatpush2.bf16.msra.mxu0 0
    %537 = vmatprep.subr.bf16.mxu0 0
    %538 = vmatpush2.bf16.msra.mxu0 0
    %539 = vmatprep.mubr.bf16.mxu0 0
    %540 = vmatmul.mubr.bf16.gmra.mxu0 %v502
    %v541 = vpop.f32.mrf.mxu0
    %v542 = vadd.f32 %v484, %v541
    %v543 = vpop.f32.mrf.mxu0
    %v544 = vpop.f32.mrf.mxu0
    %v545 = vadd.f32 %v484, %v544
    %v546 = vpop.f32.mrf.mxu0
    %547 = vdwg.mxu0
    %v548 = vadd.f32 %v86, %v542
    %v549 = vadd.f32 %v87, %v545
    %v550 = vsel %vm156, %v548, 0.0
    %551 = vadd.xlane.f32.xlu0 %v550
    %v552 = vpop.xlane.xlu0 %551
    %v553 = vsel %vm156, %v549, 0.0
    %554 = vadd.xlane.f32.xlu0 %v553
    %v555 = vpop.xlane.xlu0 %554
    %v556 = vrcp.pop 35.0
    %v557 = vmul.f32 %v552, %v556
    %v558 = vmul.f32 %v555, %v556
    %v559 = vsub.f32 %v548, %v557
    %v560 = vsub.f32 %v549, %v558
    %v561 = vmul.f32 %v559, %v559
    %v562 = vmul.f32 %v560, %v560
    %v563 = vsel %vm156, %v561, 0.0
    %564 = vadd.xlane.f32.xlu0 %v563
    %v565 = vpop.xlane.xlu0 %564
    %v566 = vsel %vm156, %v562, 0.0
    %567 = vadd.xlane.f32.xlu0 %v566
    %v568 = vpop.xlane.xlu0 %567
    %v569 = vmul.f32 %v565, %v556
    %v570 = vmul.f32 %v568, %v556
    %v571 = vadd.f32 %v569, 1e-05
    %v572 = vadd.f32 %v570, 1e-05
    %v573 = vrsqrt.pop %v571
    %v574 = vrsqrt.pop %v572
    %v575 = vmul.f32 %v559, %v573
    %v576 = vmul.f32 %v560, %v574
    %v577 = vld [vmem:[%s5] sm:$0x1]
    %v579 = vlaneseq
    %v580 = vshrl.u32 %v579, 7
    %v581 = vsub.s32 0, %v580
    %v582 = vrot.slane %v577, %v581
    %v584 = vmul.f32 %v575, %v582
    %v585 = vmul.f32 %v576, %v582
    %v586 = vld [vmem:[%s6] sm:$0x1]
    %v588 = vlaneseq
    %v589 = vshrl.u32 %v588, 7
    %v590 = vsub.s32 0, %v589
    %v591 = vrot.slane %v586, %v590
    %v593 = vadd.f32 %v584, %v591
    %v594 = vadd.f32 %v585, %v591
    %595 = vst.msk [vmem:[#allocation2] sm:$0xff] %vm156, %v593
    %596 = vst.msk [vmem:[#allocation2 + $0x8] sm:$0xff] %vm156, %v594
    %v597 = vld [vmem:[#allocation2] sm:$0x1]
    %v598 = vld [vmem:[#allocation2 + $0x8] sm:$0x1]
    %v599 = vld [vmem:[#allocation2 + $0x1] sm:$0x1]
    %v600 = vld [vmem:[#allocation2 + $0x9] sm:$0x1]
    %v601 = vld [vmem:[#allocation2 + $0x2] sm:$0x1]
    %v602 = vld [vmem:[#allocation2 + $0xa] sm:$0x1]
    %v603 = vld [vmem:[#allocation2 + $0x3] sm:$0x1]
    %v604 = vld [vmem:[#allocation2 + $0xb] sm:$0x1]
    %v605 = vld [vmem:[#allocation2 + $0x4] sm:$0x1]
    %v606 = vld [vmem:[#allocation2 + $0xc] sm:$0x1]
    %v607 = vld [vmem:[#allocation2 + $0x5] sm:$0x1]
    %v608 = vld [vmem:[#allocation2 + $0xd] sm:$0x1]
    %v609 = vld [vmem:[#allocation2 + $0x6] sm:$0x1]
    %v610 = vld [vmem:[#allocation2 + $0xe] sm:$0x1]
    %v611 = vld [vmem:[#allocation2 + $0x7] sm:$0x1]
    %v612 = vld [vmem:[#allocation2 + $0xf] sm:$0x1]
    %v615 = vrot.slane %v598, 7
    %vm616 = vcmask 1041409
    %v617 = vsel %vm616, %v615, %v597
    %v621 = vrot.slane %v600, 7
    %v622 = vsel %vm616, %v621, %v599
    %623 = vrot.lane.b32.xlu0 %v622, 35
    %v624 = vpop.permute.xlu0 %623
    %v628 = vrot.slane %v602, 7
    %v629 = vsel %vm616, %v628, %v601
    %630 = vrot.lane.b32.xlu0 %v629, 70
    %v631 = vpop.permute.xlu0 %630
    %v635 = vrot.slane %v604, 7
    %v636 = vsel %vm616, %v635, %v603
    %637 = vrot.lane.b32.xlu0 %v636, 105
    %v638 = vpop.permute.xlu0 %637
    %v642 = vrot.slane %v606, 7
    %v643 = vsel %vm616, %v642, %v605
    %644 = vrot.lane.b32.xlu0 %v643, 12
    %v645 = vpop.permute.xlu0 %644
    %v649 = vrot.slane %v608, 7
    %v650 = vsel %vm616, %v649, %v607
    %651 = vrot.lane.b32.xlu0 %v650, 47
    %v652 = vpop.permute.xlu0 %651
    %v656 = vrot.slane %v610, 7
    %v657 = vsel %vm616, %v656, %v609
    %658 = vrot.lane.b32.xlu0 %v657, 82
    %v659 = vpop.permute.xlu0 %658
    %v663 = vrot.slane %v612, 7
    %v664 = vsel %vm616, %v663, %v611
    %665 = vrot.lane.b32.xlu0 %v664, 117
    %v666 = vpop.permute.xlu0 %665
    %v668 = vsel %vm156, %v617, %v624
    %vm669 = vcmask 572416
    %v670 = vsel %vm669, %v668, %v631
    %vm671 = vcmask 859136
    %v672 = vsel %vm671, %v670, %v638
    %vm673 = vcmask 97280
    %v674 = vsel %vm673, %v638, %v645
    %vm675 = vcmask 384000
    %v676 = vsel %vm675, %v674, %v652
    %vm677 = vcmask 670720
    %v678 = vsel %vm677, %v676, %v659
    %vm679 = vcmask 957440
    %v680 = vsel %vm679, %v678, %v666
    %v681 = vpack.c.bf16 %v672, %v672
    %v682 = vpack.c.bf16 %v680, %v680
    %v683 = vpack.c.bf16 %v666, %v666
    %v684 = vld [vmem:[#allocation3] sm:$0xff]
    %v685 = vld [vmem:[#allocation3 + $0x8] sm:$0xff]
    %v686 = vld [vmem:[#allocation3 + $0x10] sm:$0xff]
    %v687 = vld [vmem:[#allocation3 + $0x18] sm:$0xff]
    %v688 = vld [vmem:[#allocation3 + $0x20] sm:$0xff]
    %v689 = vld [vmem:[#allocation3 + $0x28] sm:$0xff]
    %v690 = vld [vmem:[#allocation3 + $0x30] sm:$0xff]
    %v691 = vld [vmem:[#allocation3 + $0x38] sm:$0xff]
    %v692 = vld [vmem:[#allocation3 + $0x40] sm:$0xff]
    %v693 = vld [vmem:[#allocation3 + $0x48] sm:$0xff]
    %v694 = vld [vmem:[#allocation3 + $0x50] sm:$0xff]
    %v695 = vld [vmem:[#allocation3 + $0x58] sm:$0xff]
    %v696 = vld [vmem:[#allocation3 + $0x60] sm:$0xff]
    %v697 = vld [vmem:[#allocation3 + $0x68] sm:$0xff]
    %v698 = vld [vmem:[#allocation3 + $0x70] sm:$0xff]
    %v699 = vld [vmem:[#allocation3 + $0x78] sm:$0xff]
    %v700 = vld [vmem:[#allocation3 + $0x80] sm:$0xff]
    %v701 = vld [vmem:[#allocation3 + $0x88] sm:$0xff]
    %v702 = vld [vmem:[#allocation3 + $0x90] sm:$0xff]
    %v703 = vld [vmem:[#allocation3 + $0x98] sm:$0xff]
    %v704 = vld [vmem:[#allocation3 + $0xa0] sm:$0xff]
    %v705 = vld [vmem:[#allocation3 + $0xa8] sm:$0xff]
    %v706 = vld [vmem:[#allocation3 + $0xb0] sm:$0xff]
    %v707 = vld [vmem:[#allocation3 + $0xb8] sm:$0xff]
    %v708 = vld [vmem:[#allocation3 + $0xc0] sm:$0xff]
    %v709 = vld [vmem:[#allocation3 + $0xc8] sm:$0xff]
    %v710 = vld [vmem:[#allocation3 + $0xd0] sm:$0xff]
    %v711 = vld [vmem:[#allocation3 + $0xd8] sm:$0xff]
    %v712 = vld [vmem:[#allocation3 + $0xe0] sm:$0xff]
    %v713 = vld [vmem:[#allocation3 + $0xe8] sm:$0xff]
    %v714 = vld [vmem:[#allocation3 + $0xf0] sm:$0xff]
    %v715 = vld [vmem:[#allocation3 + $0xf8] sm:$0xff]
    %v716 = vld [vmem:[#allocation3 + $0x100] sm:$0xff]
    %v717 = vld [vmem:[#allocation3 + $0x108] sm:$0xff]
    %v718 = vld [vmem:[#allocation3 + $0x110] sm:$0xff]
    %v719 = vld [vmem:[%s8] sm:$0x3]
    %v721 = vlaneseq
    %v722 = vshrl.u32 %v721, 7
    %v723 = vsub.s32 0, %v722
    %v724 = vrot.slane %v719, %v723
    %v725 = vlaneseq
    %v726 = vshrl.u32 %v725, 7
    %v727 = vsub.s32 1, %v726
    %v728 = vrot.slane %v719, %v727
    %v766 = vunpack.c.l.b16 %v684
    %v767 = vunpack.c.h.b16 %v684
    %v768 = vunpack.c.l.b16 %v685
    %v769 = vunpack.c.h.b16 %v685
    %v770 = vunpack.c.l.b16 %v686
    %v771 = vunpack.c.h.b16 %v686
    %v772 = vunpack.c.l.b16 %v687
    %v773 = vunpack.c.h.b16 %v687
    %v774 = vunpack.c.l.b16 %v688
    %v775 = vunpack.c.h.b16 %v688
    %v776 = vunpack.c.l.b16 %v689
    %v777 = vunpack.c.h.b16 %v689
    %v778 = vunpack.c.l.b16 %v690
    %v779 = vunpack.c.h.b16 %v690
    %v780 = vunpack.c.l.b16 %v691
    %v781 = vunpack.c.h.b16 %v691
    %v782 = vunpack.c.l.b16 %v692
    %v783 = vunpack.c.h.b16 %v692
    %v784 = vunpack.c.l.b16 %v693
    %v785 = vunpack.c.h.b16 %v693
    %v786 = vunpack.c.l.b16 %v694
    %v787 = vunpack.c.h.b16 %v694
    %v788 = vunpack.c.l.b16 %v695
    %v789 = vunpack.c.h.b16 %v695
    %v790 = vunpack.c.l.b16 %v696
    %v791 = vunpack.c.h.b16 %v696
    %v792 = vunpack.c.l.b16 %v697
    %v793 = vunpack.c.h.b16 %v697
    %v794 = vunpack.c.l.b16 %v698
    %v795 = vunpack.c.h.b16 %v698
    %v796 = vunpack.c.l.b16 %v699
    %v797 = vunpack.c.h.b16 %v699
    %v798 = vunpack.c.l.b16 %v700
    %v799 = vunpack.c.h.b16 %v700
    %v800 = vunpack.c.l.b16 %v701
    %v801 = vunpack.c.h.b16 %v701
    %v802 = vunpack.c.l.b16 %v702
    %v803 = vunpack.c.h.b16 %v702
    %v804 = vunpack.c.l.b16 %v703
    %v805 = vunpack.c.h.b16 %v703
    %v806 = vunpack.c.l.b16 %v704
    %v807 = vunpack.c.h.b16 %v704
    %v808 = vunpack.c.l.b16 %v705
    %v809 = vunpack.c.h.b16 %v705
    %v810 = vunpack.c.l.b16 %v706
    %v811 = vunpack.c.h.b16 %v706
    %v812 = vunpack.c.l.b16 %v707
    %v813 = vunpack.c.h.b16 %v707
    %v814 = vunpack.c.l.b16 %v708
    %v815 = vunpack.c.h.b16 %v708
    %v816 = vunpack.c.l.b16 %v709
    %v817 = vunpack.c.h.b16 %v709
    %v818 = vunpack.c.l.b16 %v710
    %v819 = vunpack.c.h.b16 %v710
    %v820 = vunpack.c.l.b16 %v711
    %v821 = vunpack.c.h.b16 %v711
    %v822 = vunpack.c.l.b16 %v712
    %v823 = vunpack.c.h.b16 %v712
    %v824 = vunpack.c.l.b16 %v713
    %v825 = vunpack.c.h.b16 %v713
    %v826 = vunpack.c.l.b16 %v714
    %v827 = vunpack.c.h.b16 %v714
    %v828 = vunpack.c.l.b16 %v715
    %v829 = vunpack.c.h.b16 %v715
    %v830 = vunpack.c.l.b16 %v716
    %v831 = vunpack.c.h.b16 %v716
    %v832 = vunpack.c.l.b16 %v717
    %v833 = vunpack.c.h.b16 %v717
    %v834 = vunpack.c.l.b16 %v718
    %v835 = vunpack.c.h.b16 %v718
    %v836 = vpack.c.b16 %v768, %v766
    %v837 = vpack.c.b16 %v769, %v767
    %v838 = vpack.c.b16 %v772, %v770
    %v839 = vpack.c.b16 %v773, %v771
    %v840 = vpack.c.b16 %v776, %v774
    %v841 = vpack.c.b16 %v777, %v775
    %v842 = vpack.c.b16 %v780, %v778
    %v843 = vpack.c.b16 %v781, %v779
    %v844 = vpack.c.b16 %v784, %v782
    %v845 = vpack.c.b16 %v785, %v783
    %v846 = vpack.c.b16 %v788, %v786
    %v847 = vpack.c.b16 %v789, %v787
    %v848 = vpack.c.b16 %v792, %v790
    %v849 = vpack.c.b16 %v793, %v791
    %v850 = vpack.c.b16 %v796, %v794
    %v851 = vpack.c.b16 %v797, %v795
    %v852 = vpack.c.b16 %v800, %v798
    %v853 = vpack.c.b16 %v801, %v799
    %v854 = vpack.c.b16 %v804, %v802
    %v855 = vpack.c.b16 %v805, %v803
    %v856 = vpack.c.b16 %v808, %v806
    %v857 = vpack.c.b16 %v809, %v807
    %v858 = vpack.c.b16 %v812, %v810
    %v859 = vpack.c.b16 %v813, %v811
    %v860 = vpack.c.b16 %v816, %v814
    %v861 = vpack.c.b16 %v817, %v815
    %v862 = vpack.c.b16 %v820, %v818
    %v863 = vpack.c.b16 %v821, %v819
    %v864 = vpack.c.b16 %v824, %v822
    %v865 = vpack.c.b16 %v825, %v823
    %v866 = vpack.c.b16 %v828, %v826
    %v867 = vpack.c.b16 %v829, %v827
    %v868 = vpack.c.b16 %v832, %v830
    %v869 = vpack.c.b16 %v833, %v831
    %v870 = vpack.c.b16 %v834, %v834
    %v871 = vpack.c.b16 %v835, %v835
    %vm906 = vcmask 195584
    %v908 = vsel %vm906, %v683, 0
    %v911 = vsel %vm383, %v870, 0
    %v914 = vsel %vm383, %v871, 0
    %916 = vmatprep.subr.bf16.mxu0 %v851
    %917 = vmatpush1.bf16.msra.mxu0 %v850
    %918 = vmatprep.subr.bf16.mxu0 %v849
    %919 = vmatpush1.bf16.msra.mxu0 %v848
    %920 = vmatprep.subr.bf16.mxu0 %v847
    %921 = vmatpush1.bf16.msra.mxu0 %v846
    %922 = vmatprep.subr.bf16.mxu0 %v845
    %923 = vmatpush1.bf16.msra.mxu0 %v844
    %924 = vmatprep.subr.bf16.mxu0 %v843
    %925 = vmatpush1.bf16.msra.mxu0 %v842
    %926 = vmatprep.subr.bf16.mxu0 %v841
    %927 = vmatpush1.bf16.msra.mxu0 %v840
    %928 = vmatprep.subr.bf16.mxu0 %v839
    %929 = vmatpush1.bf16.msra.mxu0 %v838
    %930 = vmatprep.subr.bf16.mxu0 %v837
    %931 = vmatpush1.bf16.msra.mxu0 %v836
    %932 = vmatprep.subr.bf16.mxu0 %v867
    %933 = vmatpush2.bf16.msra.mxu0 %v866
    %934 = vmatprep.subr.bf16.mxu0 %v865
    %935 = vmatpush2.bf16.msra.mxu0 %v864
    %936 = vmatprep.subr.bf16.mxu0 %v863
    %937 = vmatpush2.bf16.msra.mxu0 %v862
    %938 = vmatprep.subr.bf16.mxu0 %v861
    %939 = vmatpush2.bf16.msra.mxu0 %v860
    %940 = vmatprep.subr.bf16.mxu0 %v859
    %941 = vmatpush2.bf16.msra.mxu0 %v858
    %942 = vmatprep.subr.bf16.mxu0 %v857
    %943 = vmatpush2.bf16.msra.mxu0 %v856
    %944 = vmatprep.subr.bf16.mxu0 %v855
    %945 = vmatpush2.bf16.msra.mxu0 %v854
    %946 = vmatprep.subr.bf16.mxu0 %v853
    %947 = vmatpush2.bf16.msra.mxu0 %v852
    %948 = vmatprep.mubr.bf16.mxu0 %v682
    %949 = vmatmul.mubr.bf16.gmra.mxu0 %v681
    %v950 = vpop.f32.mrf.mxu0
    %v951 = vadd.f32 %v724, %v950
    %v952 = vpop.f32.mrf.mxu0
    %v953 = vadd.f32 %v728, %v952
    %v954 = vpop.f32.mrf.mxu0
    %v955 = vpop.f32.mrf.mxu0
    %956 = vdwg.mxu0
    %957 = vmatprep.subr.bf16.mxu0 0
    %958 = vmatpush1.bf16.msra.mxu0 0
    %959 = vmatprep.subr.bf16.mxu0 0
    %960 = vmatpush1.bf16.msra.mxu0 0
    %961 = vmatprep.subr.bf16.mxu0 0
    %962 = vmatpush1.bf16.msra.mxu0 0
    %963 = vmatprep.subr.bf16.mxu0 0
    %964 = vmatpush1.bf16.msra.mxu0 0
    %965 = vmatprep.subr.bf16.mxu0 0
    %966 = vmatpush1.bf16.msra.mxu0 0
    %967 = vmatprep.subr.bf16.mxu0 0
    %968 = vmatpush1.bf16.msra.mxu0 0
    %969 = vmatprep.subr.bf16.mxu0 %v914
    %970 = vmatpush1.bf16.msra.mxu0 %v911
    %971 = vmatprep.subr.bf16.mxu0 %v869
    %972 = vmatpush1.bf16.msra.mxu0 %v868
    %973 = vmatprep.subr.bf16.mxu0 0
    %974 = vmatpush2.bf16.msra.mxu0 0
    %975 = vmatprep.subr.bf16.mxu0 0
    %976 = vmatpush2.bf16.msra.mxu0 0
    %977 = vmatprep.subr.bf16.mxu0 0
    %978 = vmatpush2.bf16.msra.mxu0 0
    %979 = vmatprep.subr.bf16.mxu0 0
    %980 = vmatpush2.bf16.msra.mxu0 0
    %981 = vmatprep.subr.bf16.mxu0 0
    %982 = vmatpush2.bf16.msra.mxu0 0
    %983 = vmatprep.subr.bf16.mxu0 0
    %984 = vmatpush2.bf16.msra.mxu0 0
    %985 = vmatprep.subr.bf16.mxu0 0
    %986 = vmatpush2.bf16.msra.mxu0 0
    %987 = vmatprep.subr.bf16.mxu0 0
    %988 = vmatpush2.bf16.msra.mxu0 0
    %989 = vmatprep.mubr.bf16.mxu0 0
    %990 = vmatmul.mubr.bf16.gmra.mxu0 %v908
    %v991 = vpop.f32.mrf.mxu0
    %v992 = vadd.f32 %v951, %v991
    %v993 = vpop.f32.mrf.mxu0
    %v994 = vadd.f32 %v953, %v993
    %v995 = vpop.f32.mrf.mxu0
    %v996 = vpop.f32.mrf.mxu0
    %997 = vdwg.mxu0
    %v998 = vmax.f32 %v992, 0.0
    %v999 = vmax.f32 %v994, 0.0
    %v1000 = vpack.c.bf16 %v998, %v998
    %v1001 = vpack.c.bf16 %v999, %v999
    %v1002 = vld [vmem:[#allocation5] sm:$0xff]
    %v1003 = vld [vmem:[#allocation5 + $0x8] sm:$0xff]
    %v1004 = vld [vmem:[#allocation5 + $0x10] sm:$0xff]
    %v1005 = vld [vmem:[#allocation5 + $0x18] sm:$0xff]
    %v1006 = vld [vmem:[#allocation5 + $0x20] sm:$0xff]
    %v1007 = vld [vmem:[#allocation5 + $0x28] sm:$0xff]
    %v1008 = vld [vmem:[#allocation5 + $0x30] sm:$0xff]
    %v1009 = vld [vmem:[#allocation5 + $0x38] sm:$0xff]
    %v1010 = vld [vmem:[#allocation5 + $0x40] sm:$0xff]
    %v1011 = vld [vmem:[#allocation5 + $0x48] sm:$0xff]
    %v1012 = vld [vmem:[#allocation5 + $0x50] sm:$0xff]
    %v1013 = vld [vmem:[#allocation5 + $0x58] sm:$0xff]
    %v1014 = vld [vmem:[#allocation5 + $0x60] sm:$0xff]
    %v1015 = vld [vmem:[#allocation5 + $0x68] sm:$0xff]
    %v1016 = vld [vmem:[#allocation5 + $0x70] sm:$0xff]
    %v1017 = vld [vmem:[#allocation5 + $0x78] sm:$0xff]
    %v1018 = vld [vmem:[#allocation5 + $0x80] sm:$0xff]
    %v1019 = vld [vmem:[#allocation5 + $0x88] sm:$0xff]
    %v1020 = vld [vmem:[#allocation5 + $0x90] sm:$0xff]
    %v1021 = vld [vmem:[#allocation5 + $0x98] sm:$0xff]
    %v1022 = vld [vmem:[#allocation5 + $0xa0] sm:$0xff]
    %v1023 = vld [vmem:[#allocation5 + $0xa8] sm:$0xff]
    %v1024 = vld [vmem:[#allocation5 + $0xb0] sm:$0xff]
    %v1025 = vld [vmem:[#allocation5 + $0xb8] sm:$0xff]
    %v1026 = vld [vmem:[#allocation5 + $0xc0] sm:$0xff]
    %v1027 = vld [vmem:[#allocation5 + $0xc8] sm:$0xff]
    %v1028 = vld [vmem:[#allocation5 + $0xd0] sm:$0xff]
    %v1029 = vld [vmem:[#allocation5 + $0xd8] sm:$0xff]
    %v1030 = vld [vmem:[#allocation5 + $0xe0] sm:$0xff]
    %v1031 = vld [vmem:[#allocation5 + $0xe8] sm:$0xff]
    %v1032 = vld [vmem:[#allocation5 + $0xf0] sm:$0xff]
    %v1033 = vld [vmem:[#allocation5 + $0xf8] sm:$0xff]
    %v1034 = vld [vmem:[%s10] sm:$0x3]
    %v1036 = vlaneseq
    %v1037 = vshrl.u32 %v1036, 7
    %v1038 = vsub.s32 0, %v1037
    %v1039 = vrot.slane %v1034, %v1038
    %v1040 = vlaneseq
    %v1041 = vshrl.u32 %v1040, 7
    %v1042 = vsub.s32 1, %v1041
    %v1043 = vrot.slane %v1034, %v1042
    %v1078 = vunpack.c.l.b16 %v1002
    %v1079 = vunpack.c.h.b16 %v1002
    %v1080 = vunpack.c.l.b16 %v1003
    %v1081 = vunpack.c.h.b16 %v1003
    %v1082 = vunpack.c.l.b16 %v1004
    %v1083 = vunpack.c.h.b16 %v1004
    %v1084 = vunpack.c.l.b16 %v1005
    %v1085 = vunpack.c.h.b16 %v1005
    %v1086 = vunpack.c.l.b16 %v1006
    %v1087 = vunpack.c.h.b16 %v1006
    %v1088 = vunpack.c.l.b16 %v1007
    %v1089 = vunpack.c.h.b16 %v1007
    %v1090 = vunpack.c.l.b16 %v1008
    %v1091 = vunpack.c.h.b16 %v1008
    %v1092 = vunpack.c.l.b16 %v1009
    %v1093 = vunpack.c.h.b16 %v1009
    %v1094 = vunpack.c.l.b16 %v1010
    %v1095 = vunpack.c.h.b16 %v1010
    %v1096 = vunpack.c.l.b16 %v1011
    %v1097 = vunpack.c.h.b16 %v1011
    %v1098 = vunpack.c.l.b16 %v1012
    %v1099 = vunpack.c.h.b16 %v1012
    %v1100 = vunpack.c.l.b16 %v1013
    %v1101 = vunpack.c.h.b16 %v1013
    %v1102 = vunpack.c.l.b16 %v1014
    %v1103 = vunpack.c.h.b16 %v1014
    %v1104 = vunpack.c.l.b16 %v1015
    %v1105 = vunpack.c.h.b16 %v1015
    %v1106 = vunpack.c.l.b16 %v1016
    %v1107 = vunpack.c.h.b16 %v1016
    %v1108 = vunpack.c.l.b16 %v1017
    %v1109 = vunpack.c.h.b16 %v1017
    %v1110 = vunpack.c.l.b16 %v1018
    %v1111 = vunpack.c.h.b16 %v1018
    %v1112 = vunpack.c.l.b16 %v1019
    %v1113 = vunpack.c.h.b16 %v1019
    %v1114 = vunpack.c.l.b16 %v1020
    %v1115 = vunpack.c.h.b16 %v1020
    %v1116 = vunpack.c.l.b16 %v1021
    %v1117 = vunpack.c.h.b16 %v1021
    %v1118 = vunpack.c.l.b16 %v1022
    %v1119 = vunpack.c.h.b16 %v1022
    %v1120 = vunpack.c.l.b16 %v1023
    %v1121 = vunpack.c.h.b16 %v1023
    %v1122 = vunpack.c.l.b16 %v1024
    %v1123 = vunpack.c.h.b16 %v1024
    %v1124 = vunpack.c.l.b16 %v1025
    %v1125 = vunpack.c.h.b16 %v1025
    %v1126 = vunpack.c.l.b16 %v1026
    %v1127 = vunpack.c.h.b16 %v1026
    %v1128 = vunpack.c.l.b16 %v1027
    %v1129 = vunpack.c.h.b16 %v1027
    %v1130 = vunpack.c.l.b16 %v1028
    %v1131 = vunpack.c.h.b16 %v1028
    %v1132 = vunpack.c.l.b16 %v1029
    %v1133 = vunpack.c.h.b16 %v1029
    %v1134 = vunpack.c.l.b16 %v1030
    %v1135 = vunpack.c.h.b16 %v1030
    %v1136 = vunpack.c.l.b16 %v1031
    %v1137 = vunpack.c.h.b16 %v1031
    %v1138 = vunpack.c.l.b16 %v1032
    %v1139 = vunpack.c.h.b16 %v1032
    %v1140 = vunpack.c.l.b16 %v1033
    %v1141 = vunpack.c.h.b16 %v1033
    %v1142 = vpack.c.b16 %v1080, %v1078
    %v1143 = vpack.c.b16 %v1081, %v1079
    %v1144 = vpack.c.b16 %v1084, %v1082
    %v1145 = vpack.c.b16 %v1085, %v1083
    %v1146 = vpack.c.b16 %v1088, %v1086
    %v1147 = vpack.c.b16 %v1089, %v1087
    %v1148 = vpack.c.b16 %v1092, %v1090
    %v1149 = vpack.c.b16 %v1093, %v1091
    %v1150 = vpack.c.b16 %v1096, %v1094
    %v1151 = vpack.c.b16 %v1097, %v1095
    %v1152 = vpack.c.b16 %v1100, %v1098
    %v1153 = vpack.c.b16 %v1101, %v1099
    %v1154 = vpack.c.b16 %v1104, %v1102
    %v1155 = vpack.c.b16 %v1105, %v1103
    %v1156 = vpack.c.b16 %v1108, %v1106
    %v1157 = vpack.c.b16 %v1109, %v1107
    %v1158 = vpack.c.b16 %v1112, %v1110
    %v1159 = vpack.c.b16 %v1113, %v1111
    %v1160 = vpack.c.b16 %v1116, %v1114
    %v1161 = vpack.c.b16 %v1117, %v1115
    %v1162 = vpack.c.b16 %v1120, %v1118
    %v1163 = vpack.c.b16 %v1121, %v1119
    %v1164 = vpack.c.b16 %v1124, %v1122
    %v1165 = vpack.c.b16 %v1125, %v1123
    %v1166 = vpack.c.b16 %v1128, %v1126
    %v1167 = vpack.c.b16 %v1129, %v1127
    %v1168 = vpack.c.b16 %v1132, %v1130
    %v1169 = vpack.c.b16 %v1133, %v1131
    %v1170 = vpack.c.b16 %v1136, %v1134
    %v1171 = vpack.c.b16 %v1137, %v1135
    %v1172 = vpack.c.b16 %v1140, %v1138
    %v1173 = vpack.c.b16 %v1141, %v1139
    %1206 = vmatprep.subr.bf16.mxu0 %v1157
    %1207 = vmatpush1.bf16.msra.mxu0 %v1156
    %1208 = vmatprep.subr.bf16.mxu0 %v1155
    %1209 = vmatpush1.bf16.msra.mxu0 %v1154
    %1210 = vmatprep.subr.bf16.mxu0 %v1153
    %1211 = vmatpush1.bf16.msra.mxu0 %v1152
    %1212 = vmatprep.subr.bf16.mxu0 %v1151
    %1213 = vmatpush1.bf16.msra.mxu0 %v1150
    %1214 = vmatprep.subr.bf16.mxu0 %v1149
    %1215 = vmatpush1.bf16.msra.mxu0 %v1148
    %1216 = vmatprep.subr.bf16.mxu0 %v1147
    %1217 = vmatpush1.bf16.msra.mxu0 %v1146
    %1218 = vmatprep.subr.bf16.mxu0 %v1145
    %1219 = vmatpush1.bf16.msra.mxu0 %v1144
    %1220 = vmatprep.subr.bf16.mxu0 %v1143
    %1221 = vmatpush1.bf16.msra.mxu0 %v1142
    %1222 = vmatprep.subr.bf16.mxu0 %v1173
    %1223 = vmatpush2.bf16.msra.mxu0 %v1172
    %1224 = vmatprep.subr.bf16.mxu0 %v1171
    %1225 = vmatpush2.bf16.msra.mxu0 %v1170
    %1226 = vmatprep.subr.bf16.mxu0 %v1169
    %1227 = vmatpush2.bf16.msra.mxu0 %v1168
    %1228 = vmatprep.subr.bf16.mxu0 %v1167
    %1229 = vmatpush2.bf16.msra.mxu0 %v1166
    %1230 = vmatprep.subr.bf16.mxu0 %v1165
    %1231 = vmatpush2.bf16.msra.mxu0 %v1164
    %1232 = vmatprep.subr.bf16.mxu0 %v1163
    %1233 = vmatpush2.bf16.msra.mxu0 %v1162
    %1234 = vmatprep.subr.bf16.mxu0 %v1161
    %1235 = vmatpush2.bf16.msra.mxu0 %v1160
    %1236 = vmatprep.subr.bf16.mxu0 %v1159
    %1237 = vmatpush2.bf16.msra.mxu0 %v1158
    %1238 = vmatprep.mubr.bf16.mxu0 %v1001
    %1239 = vmatmul.mubr.bf16.gmra.mxu0 %v1000
    %v1240 = vpop.f32.mrf.mxu0
    %v1241 = vadd.f32 %v1039, %v1240
    %v1242 = vpop.f32.mrf.mxu0
    %v1243 = vadd.f32 %v1043, %v1242
    %v1244 = vpop.f32.mrf.mxu0
    %v1245 = vpop.f32.mrf.mxu0
    %1246 = vdwg.mxu0
    %v1247 = vmax.f32 %v1241, 0.0
    %v1248 = vmax.f32 %v1243, 0.0
    %v1249 = vpack.c.bf16 %v1247, %v1247
    %v1250 = vpack.c.bf16 %v1248, %v1248
    %v1251 = vld [vmem:[#allocation7] sm:$0xf]
    %v1252 = vld [vmem:[#allocation7 + $0x4] sm:$0xf]
    %v1253 = vld [vmem:[#allocation7 + $0x8] sm:$0xf]
    %v1254 = vld [vmem:[#allocation7 + $0xc] sm:$0xf]
    %v1255 = vld [vmem:[#allocation7 + $0x10] sm:$0xf]
    %v1256 = vld [vmem:[#allocation7 + $0x14] sm:$0xf]
    %v1257 = vld [vmem:[#allocation7 + $0x18] sm:$0xf]
    %v1258 = vld [vmem:[#allocation7 + $0x1c] sm:$0xf]
    %v1259 = vld [vmem:[#allocation7 + $0x20] sm:$0xf]
    %v1260 = vld [vmem:[#allocation7 + $0x24] sm:$0xf]
    %v1261 = vld [vmem:[#allocation7 + $0x28] sm:$0xf]
    %v1262 = vld [vmem:[#allocation7 + $0x2c] sm:$0xf]
    %v1263 = vld [vmem:[#allocation7 + $0x30] sm:$0xf]
    %v1264 = vld [vmem:[#allocation7 + $0x34] sm:$0xf]
    %v1265 = vld [vmem:[#allocation7 + $0x38] sm:$0xf]
    %v1266 = vld [vmem:[#allocation7 + $0x3c] sm:$0xf]
    %v1267 = vld [vmem:[#allocation7 + $0x40] sm:$0xf]
    %v1268 = vld [vmem:[#allocation7 + $0x44] sm:$0xf]
    %v1269 = vld [vmem:[#allocation7 + $0x48] sm:$0xf]
    %v1270 = vld [vmem:[#allocation7 + $0x4c] sm:$0xf]
    %v1271 = vld [vmem:[#allocation7 + $0x50] sm:$0xf]
    %v1272 = vld [vmem:[#allocation7 + $0x54] sm:$0xf]
    %v1273 = vld [vmem:[#allocation7 + $0x58] sm:$0xf]
    %v1274 = vld [vmem:[#allocation7 + $0x5c] sm:$0xf]
    %v1275 = vld [vmem:[#allocation7 + $0x60] sm:$0xf]
    %v1276 = vld [vmem:[#allocation7 + $0x64] sm:$0xf]
    %v1277 = vld [vmem:[#allocation7 + $0x68] sm:$0xf]
    %v1278 = vld [vmem:[#allocation7 + $0x6c] sm:$0xf]
    %v1279 = vld [vmem:[#allocation7 + $0x70] sm:$0xf]
    %v1280 = vld [vmem:[#allocation7 + $0x74] sm:$0xf]
    %v1281 = vld [vmem:[#allocation7 + $0x78] sm:$0xf]
    %v1282 = vld [vmem:[#allocation7 + $0x7c] sm:$0xf]
    %v1283 = vld [vmem:[%s12] sm:$0x1]
    %v1285 = vlaneseq
    %v1286 = vshrl.u32 %v1285, 7
    %v1287 = vsub.s32 0, %v1286
    %v1288 = vrot.slane %v1283, %v1287
    %v1322 = vunpack.c.l.b16 %v1251
    %v1323 = vunpack.c.l.b16 %v1252
    %v1324 = vunpack.c.l.b16 %v1253
    %v1325 = vunpack.c.l.b16 %v1254
    %v1326 = vunpack.c.l.b16 %v1255
    %v1327 = vunpack.c.l.b16 %v1256
    %v1328 = vunpack.c.l.b16 %v1257
    %v1329 = vunpack.c.l.b16 %v1258
    %v1330 = vunpack.c.l.b16 %v1259
    %v1331 = vunpack.c.l.b16 %v1260
    %v1332 = vunpack.c.l.b16 %v1261
    %v1333 = vunpack.c.l.b16 %v1262
    %v1334 = vunpack.c.l.b16 %v1263
    %v1335 = vunpack.c.l.b16 %v1264
    %v1336 = vunpack.c.l.b16 %v1265
    %v1337 = vunpack.c.l.b16 %v1266
    %v1338 = vunpack.c.l.b16 %v1267
    %v1339 = vunpack.c.l.b16 %v1268
    %v1340 = vunpack.c.l.b16 %v1269
    %v1341 = vunpack.c.l.b16 %v1270
    %v1342 = vunpack.c.l.b16 %v1271
    %v1343 = vunpack.c.l.b16 %v1272
    %v1344 = vunpack.c.l.b16 %v1273
    %v1345 = vunpack.c.l.b16 %v1274
    %v1346 = vunpack.c.l.b16 %v1275
    %v1347 = vunpack.c.l.b16 %v1276
    %v1348 = vunpack.c.l.b16 %v1277
    %v1349 = vunpack.c.l.b16 %v1278
    %v1350 = vunpack.c.l.b16 %v1279
    %v1351 = vunpack.c.l.b16 %v1280
    %v1352 = vunpack.c.l.b16 %v1281
    %v1353 = vunpack.c.l.b16 %v1282
    %v1354 = vpack.c.b16 %v1323, %v1322
    %v1355 = vpack.c.b16 %v1325, %v1324
    %v1356 = vpack.c.b16 %v1327, %v1326
    %v1357 = vpack.c.b16 %v1329, %v1328
    %v1358 = vpack.c.b16 %v1331, %v1330
    %v1359 = vpack.c.b16 %v1333, %v1332
    %v1360 = vpack.c.b16 %v1335, %v1334
    %v1361 = vpack.c.b16 %v1337, %v1336
    %v1362 = vpack.c.b16 %v1339, %v1338
    %v1363 = vpack.c.b16 %v1341, %v1340
    %v1364 = vpack.c.b16 %v1343, %v1342
    %v1365 = vpack.c.b16 %v1345, %v1344
    %v1366 = vpack.c.b16 %v1347, %v1346
    %v1367 = vpack.c.b16 %v1349, %v1348
    %v1368 = vpack.c.b16 %v1351, %v1350
    %v1369 = vpack.c.b16 %v1353, %v1352
    %1386 = vmatprep.subr.bf16.mxu0 0
    %1387 = vmatpush1.bf16.msra.mxu0 %v1361
    %1388 = vmatprep.subr.bf16.mxu0 0
    %1389 = vmatpush1.bf16.msra.mxu0 %v1360
    %1390 = vmatprep.subr.bf16.mxu0 0
    %1391 = vmatpush1.bf16.msra.mxu0 %v1359
    %1392 = vmatprep.subr.bf16.mxu0 0
    %1393 = vmatpush1.bf16.msra.mxu0 %v1358
    %1394 = vmatprep.subr.bf16.mxu0 0
    %1395 = vmatpush1.bf16.msra.mxu0 %v1357
    %1396 = vmatprep.subr.bf16.mxu0 0
    %1397 = vmatpush1.bf16.msra.mxu0 %v1356
    %1398 = vmatprep.subr.bf16.mxu0 0
    %1399 = vmatpush1.bf16.msra.mxu0 %v1355
    %1400 = vmatprep.subr.bf16.mxu0 0
    %1401 = vmatpush1.bf16.msra.mxu0 %v1354
    %1402 = vmatprep.subr.bf16.mxu0 0
    %1403 = vmatpush2.bf16.msra.mxu0 %v1369
    %1404 = vmatprep.subr.bf16.mxu0 0
    %1405 = vmatpush2.bf16.msra.mxu0 %v1368
    %1406 = vmatprep.subr.bf16.mxu0 0
    %1407 = vmatpush2.bf16.msra.mxu0 %v1367
    %1408 = vmatprep.subr.bf16.mxu0 0
    %1409 = vmatpush2.bf16.msra.mxu0 %v1366
    %1410 = vmatprep.subr.bf16.mxu0 0
    %1411 = vmatpush2.bf16.msra.mxu0 %v1365
    %1412 = vmatprep.subr.bf16.mxu0 0
    %1413 = vmatpush2.bf16.msra.mxu0 %v1364
    %1414 = vmatprep.subr.bf16.mxu0 0
    %1415 = vmatpush2.bf16.msra.mxu0 %v1363
    %1416 = vmatprep.subr.bf16.mxu0 0
    %1417 = vmatpush2.bf16.msra.mxu0 %v1362
    %1418 = vmatprep.mubr.bf16.mxu0 %v1250
    %1419 = vmatmul.mubr.bf16.gmra.mxu0 %v1249
    %v1420 = vpop.f32.mrf.mxu0
    %v1421 = vadd.f32 %v1288, %v1420
    %v1422 = vpop.f32.mrf.mxu0
    %v1423 = vpop.f32.mrf.mxu0
    %v1424 = vpop.f32.mrf.mxu0
    %1425 = vdwg.mxu0
    %1426 = vst [vmem:[%s13] sm:$0x3] %v1421
    // Predicated region
    $region66: #{_lambda_.1} parent=1 // pred_check
      _
    $region67: #{_lambda_.1} parent=1 // pred_check_branch
      %1428 = sbr.rel (0) target = $region69
    $region68: #{_lambda_.1} parent=1 // pred_region
      _
    $region69: #{_lambda_.1} parent=1 // pred_fallthru
      _
    // Predicated region
    $region70: #{_lambda_.1} parent=1 // pred_check
      _
    $region71: #{_lambda_.1} parent=1 // pred_check_branch
      %1430 = sbr.rel (0) target = $region73
    $region72: #{_lambda_.1} parent=1 // pred_region
      _
    $region73: #{_lambda_.1} parent=1 // pred_fallthru
      _
    %1431 = vsyncpa [#allocation4], 1
    %1432 = vsyncpa [#allocation6], 1

</llo_original>
